<compile_context>
chip_gen: v5e
topology: v5e:2x2
jax: 0.10.0
libtpu: 0.0.40
codegen_flags: <defaults>
</compile_context>

<pallas_src>
import functools

import jax
import jax.numpy as jnp
from jax.experimental import pallas as pl
from jax.experimental.pallas import tpu as pltpu


# -----------------------------------------------------------------------------
# Small vision-transformer config (synthetic, shapes consistent with CLIP ViT).
# -----------------------------------------------------------------------------
class Cfg:
    image_size = 16
    patch_size = 8
    num_channels = 3
    hidden_size = 32
    intermediate_size = 64
    num_heads = 4
    num_layers = 3
    layer_norm_eps = 1e-5


SELECT_LAYER = -2          # args.mm_vision_select_layer
SELECT_FEATURE = "patch"   # args.mm_vision_select_feature
COMPUTE_DTYPE = jnp.bfloat16   # self.dtype == torch.bfloat16


def _layernorm_f32(x, g, b, eps):
    mean = jnp.mean(x, axis=-1, keepdims=True)
    var = jnp.mean(jnp.square(x - mean), axis=-1, keepdims=True)
    return (x - mean) * jax.lax.rsqrt(var + eps) * g + b


# -----------------------------------------------------------------------------
# Fused tower kernel.  Grid = (batch, layer).
# -----------------------------------------------------------------------------
def _tower_kernel(
    patches_ref, conv_w_ref, cls_ref, pos_ref, pre_g_ref, pre_b_ref,
    ln1_g_ref, ln1_b_ref, qkv_w_ref, qkv_b_ref, o_w_ref, o_b_ref,
    ln2_g_ref, ln2_b_ref, fc1_w_ref, fc1_b_ref, fc2_w_ref, fc2_b_ref,
    out_ref, h_ref,
    *, D, S, S_pad, num_patches, heads, head_dim, eps, keep_cls,
):
    f32 = jnp.float32
    bf16 = COMPUTE_DTYPE
    layer = pl.program_id(1)
    n_layers = pl.num_programs(1)

    # ---- layer step 0: patch embedding + CLS/pos fold + pre-LayerNorm ----
    @pl.when(layer == 0)
    def _init():
        # Conv2d(stride=patch, bias=False) over non-overlapping patches == matmul.
        pe = jnp.dot(patches_ref[0], conv_w_ref[...],
                     preferred_element_type=f32) + pos_ref[...].astype(f32)
        cls = cls_ref[...].astype(f32)            # class_embedding + pos[0]
        if S_pad > S:
            pad = jnp.zeros((S_pad - S, D), f32)
            tokens = jnp.concatenate([cls, pe, pad], axis=0)   # (S_pad, D)
        else:
            tokens = jnp.concatenate([cls, pe], axis=0)
        h_ref[...] = _layernorm_f32(tokens, pre_g_ref[...], pre_b_ref[...], eps)

    hidden = h_ref[...]                            # (S_pad, D) f32 residual stream

    # Tiny in-kernel additive mask for the padded key rows (no HBM traffic).
    if S_pad > S:
        kpos = jax.lax.broadcasted_iota(jnp.int32, (1, S_pad), 1)
        kmask = jnp.where(kpos < S, 0.0, -1e30).astype(f32)
    else:
        kmask = None

    # ---------------- self-attention block ----------------
    h1 = _layernorm_f32(hidden, ln1_g_ref[0], ln1_b_ref[0], eps)
    hb = h1.astype(bf16)
    # Fused QKV projection: one (S_pad, D) x (D, 3D) matmul.
    # 1/sqrt(head_dim) is already folded into the Q slice of the weights/bias.
    qkv = jnp.dot(hb, qkv_w_ref[0], preferred_element_type=f32) + qkv_b_ref[0]

    ctx_heads = []
    for h in range(heads):                         # heads is small; scores/context
        lo = h * head_dim                          # dots are inherently per-head
        q = qkv[:, lo:lo + head_dim]
        k = qkv[:, D + lo:D + lo + head_dim]
        v = qkv[:, 2 * D + lo:2 * D + lo + head_dim]
        s = jnp.einsum('qd,kd->qk', q.astype(bf16), k.astype(bf16),
                       preferred_element_type=f32)
        if kmask is not None:
            s = s + kmask
        s = s - jnp.max(s, axis=-1, keepdims=True)
        p = jnp.exp(s)
        p = p * pl.reciprocal(jnp.sum(p, axis=-1, keepdims=True), approx=True)
        ctx_heads.append(jnp.dot(p.astype(bf16), v.astype(bf16),
                                 preferred_element_type=f32))
    ctx = jnp.concatenate(ctx_heads, axis=-1)      # concat heads -> (S_pad, D)
    # Fused output projection: one (S_pad, D) x (D, D) matmul.
    attn = jnp.dot(ctx.astype(bf16), o_w_ref[0],
                   preferred_element_type=f32) + o_b_ref[0]
    hidden = hidden + attn

    # ---------------- MLP block (quick_gelu) ----------------
    h2 = _layernorm_f32(hidden, ln2_g_ref[0], ln2_b_ref[0], eps)
    f1 = jnp.dot(h2.astype(bf16), fc1_w_ref[0],
                 preferred_element_type=f32) + fc1_b_ref[0]
    f1 = f1 * jax.nn.sigmoid(1.702 * f1)
    f2 = jnp.dot(f1.astype(bf16), fc2_w_ref[0],
                 preferred_element_type=f32) + fc2_b_ref[0]
    hidden = hidden + f2

    h_ref[...] = hidden                            # carry to the next layer step

    # ---- feature_select on the last needed layer: drop CLS unless 'cls_patch' ----
    @pl.when(layer == n_layers - 1)
    def _emit():
        off = 0 if keep_cls else 1
        rows = S if keep_cls else num_patches
        out_ref[...] = hidden[off:off + rows, :][None].astype(out_ref.dtype)


# -----------------------------------------------------------------------------
# Deterministic parameter init (shapes follow ChineseCLIPVisionModel).
# -----------------------------------------------------------------------------
def init_params(key, cfg):
    D, I, C, P = cfg.hidden_size, cfg.intermediate_size, cfg.num_channels, cfg.patch_size
    num_patches = (cfg.image_size // cfg.patch_size) ** 2
    num_pos = num_patches + 1

    def nrm(k, shape, std=0.02):
        return (std * jax.random.normal(k, shape, dtype=jnp.float32)).astype(COMPUTE_DTYPE)

    keys = iter(jax.random.split(key, 8 + 16 * cfg.num_layers))
    p = {
        "class_embedding": nrm(next(keys), (D,)),
        # Conv2d(C, D, kernel=P, stride=P, bias=False) weight, PyTorch layout (D, C, P, P)
        "patch_embedding_w": nrm(next(keys), (D, C, P, P)),
        "position_embedding": nrm(next(keys), (num_pos, D)),
        "pre_ln_g": jnp.ones((1, D), COMPUTE_DTYPE),
        "pre_ln_b": jnp.zeros((1, D), COMPUTE_DTYPE),
        "layers": [],
    }
    for _ in range(cfg.num_layers):
        lyr = {
            "ln1_g": jnp.ones((1, D), COMPUTE_DTYPE), "ln1_b": jnp.zeros((1, D), COMPUTE_DTYPE),
            "q_w": nrm(next(keys), (D, D)), "q_b": nrm(next(keys), (1, D)),
            "k_w": nrm(next(keys), (D, D)), "k_b": nrm(next(keys), (1, D)),
            "v_w": nrm(next(keys), (D, D)), "v_b": nrm(next(keys), (1, D)),
            "o_w": nrm(next(keys), (D, D)), "o_b": nrm(next(keys), (1, D)),
            "ln2_g": jnp.ones((1, D), COMPUTE_DTYPE), "ln2_b": jnp.zeros((1, D), COMPUTE_DTYPE),
            "fc1_w": nrm(next(keys), (D, I)), "fc1_b": nrm(next(keys), (1, I)),
            "fc2_w": nrm(next(keys), (I, D)), "fc2_b": nrm(next(keys), (1, D)),
        }
        p["layers"].append(lyr)
    return p


def prepare_params(params, cfg):
    """One-time fold/stack of raw params into kernel-ready tensors."""
    D, C, P = cfg.hidden_size, cfg.num_channels, cfg.patch_size
    heads = cfg.num_heads
    hd = D // heads
    scale = hd ** -0.5
    f32 = jnp.float32

    # hidden_states[SELECT_LAYER] only needs the first n_layers layers; the
    # remaining layers (e.g. the last one for -2) are never computed or loaded.
    if SELECT_LAYER < 0:
        n_layers = cfg.num_layers + 1 + SELECT_LAYER
    else:
        n_layers = SELECT_LAYER
    n_layers = max(0, min(cfg.num_layers, n_layers))
    layers = params["layers"][:n_layers]

    def stack_f32(name):
        return jnp.stack([l[name].astype(f32) for l in layers], axis=0)

    def stack_bf16(name):
        return jnp.stack([l[name].astype(COMPUTE_DTYPE) for l in layers], axis=0)

    # Fused QKV weights with the attention scale folded into the Q slice.
    qkv_w = jnp.stack([
        jnp.concatenate(
            [(l["q_w"].astype(f32) * scale).astype(COMPUTE_DTYPE),
             l["k_w"].astype(COMPUTE_DTYPE),
             l["v_w"].astype(COMPUTE_DTYPE)], axis=1)
        for l in layers], axis=0)                               # (L, D, 3D) bf16
    qkv_b = jnp.stack([
        jnp.concatenate(
            [l["q_b"].astype(f32) * scale,
             l["k_b"].astype(f32),
             l["v_b"].astype(f32)], axis=1)
        for l in layers], axis=0)                               # (L, 1, 3D) f32

    pos = params["position_embedding"]
    return dict(
        n_layers=n_layers,
        # conv weight pre-flattened/transposed once (Conv2d == matmul on patches)
        conv_w=params["patch_embedding_w"].reshape(D, C * P * P).T.astype(COMPUTE_DTYPE),
        cls_row=(params["class_embedding"].astype(f32)[None, :]
                 + pos[0:1, :].astype(f32)).astype(COMPUTE_DTYPE),   # CLS + pos[0]
        pos_patch=pos[1:, :].astype(COMPUTE_DTYPE),
        pre_g=params["pre_ln_g"].astype(f32), pre_b=params["pre_ln_b"].astype(f32),
        ln1_g=stack_f32("ln1_g"), ln1_b=stack_f32("ln1_b"),
        qkv_w=qkv_w, qkv_b=qkv_b,
        o_w=stack_bf16("o_w"), o_b=stack_f32("o_b"),
        ln2_g=stack_f32("ln2_g"), ln2_b=stack_f32("ln2_b"),
        fc1_w=stack_bf16("fc1_w"), fc1_b=stack_f32("fc1_b"),
        fc2_w=stack_bf16("fc2_w"), fc2_b=stack_f32("fc2_b"),
    )


# -----------------------------------------------------------------------------
# Forward pass (= ChineseCLIPVisionTower.forward with tensor input).
# TODO(synk): the list-of-images path of the PyTorch forward is just a Python
# loop over this same tensor path; not reproduced here.
# -----------------------------------------------------------------------------
def vision_tower_forward(images, kparams, cfg):
    """images: (B, C, H, W) float32 (NCHW). Returns selected features in images.dtype."""
    if SELECT_FEATURE not in ("patch", "cls_patch"):
        raise ValueError(f"Unexpected select feature: {SELECT_FEATURE}")
    keep_cls = SELECT_FEATURE == "cls_patch"

    in_dtype = images.dtype
    B, C, H, W = images.shape
    P, D = cfg.patch_size, cfg.hidden_size
    heads = cfg.num_heads
    head_dim = D // heads
    nH, nW = H // P, W // P
    num_patches = nH * nW
    S = num_patches + 1
    S_pad = ((S + 7) // 8) * 8                       # sublane-aligned token axis
    rows = S if keep_cls else num_patches
    n_layers = kparams["n_layers"]
    assert n_layers >= 1, "select_layer must keep at least one transformer layer"

    # images.to(dtype=self.dtype) == bf16; extract non-overlapping patches (NCHW).
    x = images.astype(COMPUTE_DTYPE)
    patches = x.reshape(B, C, nH, P, nW, P).transpose(0, 2, 4, 1, 3, 5)
    patches = patches.reshape(B, num_patches, C * P * P)

    kernel = functools.partial(
        _tower_kernel, D=D, S=S, S_pad=S_pad, num_patches=num_patches,
        heads=heads, head_dim=head_dim, eps=cfg.layer_norm_eps, keep_cls=keep_cls)

    def const_spec(shape):
        nd = len(shape)
        return pl.BlockSpec(shape, lambda b, l: (0,) * nd)

    def batch_spec(shape):        # leading dim = batch, one image per grid step
        nd = len(shape)
        return pl.BlockSpec((1,) + shape[1:], lambda b, l: (b,) + (0,) * (nd - 1))

    def layer_spec(shape):        # leading dim = layer, streamed per grid step
        nd = len(shape)
        return pl.BlockSpec((1,) + shape[1:], lambda b, l: (l,) + (0,) * (nd - 1))

    inputs = (
        patches,
        kparams["conv_w"], kparams["cls_row"], kparams["pos_patch"],
        kparams["pre_g"], kparams["pre_b"],
        kparams["ln1_g"], kparams["ln1_b"],
        kparams["qkv_w"], kparams["qkv_b"], kparams["o_w"], kparams["o_b"],
        kparams["ln2_g"], kparams["ln2_b"],
        kparams["fc1_w"], kparams["fc1_b"], kparams["fc2_w"], kparams["fc2_b"],
    )
    in_specs = (
        [batch_spec(patches.shape)]
        + [const_spec(t.shape) for t in inputs[1:6]]
        + [layer_spec(t.shape) for t in inputs[6:]]
    )

    out = pl.pallas_call(
        kernel,
        out_shape=jax.ShapeDtypeStruct((B, rows, D), in_dtype),
        grid=(B, n_layers),
        in_specs=in_specs,
        out_specs=pl.BlockSpec((1, rows, D), lambda b, l: (b, 0, 0)),
        scratch_shapes=[
            pltpu.VMEM((S_pad, D), jnp.float32),     # per-image residual stream
        ],
        compiler_params=pltpu.CompilerParams(
            dimension_semantics=("parallel", "arbitrary")),
    )(*inputs)
    return out   # already in images.dtype  (== .to(images.dtype))


# -----------------------------------------------------------------------------
if __name__ == "__main__":
    cfg = Cfg()
    key = jax.random.PRNGKey(0)
    k_params, k_img = jax.random.split(key)

    raw_params = init_params(k_params, cfg)
    kparams = prepare_params(raw_params, cfg)   # one-time weight folding/stacking

    images = jax.random.normal(
        k_img, (2, cfg.num_channels, cfg.image_size, cfg.image_size), dtype=jnp.float32)

    fwd = jax.jit(lambda im: vision_tower_forward(im, kparams, cfg))
    feats = fwd(images)
    jax.block_until_ready(feats)

    expected_patches = (cfg.image_size // cfg.patch_size) ** 2
    assert feats.shape == (2, expected_patches, cfg.hidden_size), feats.shape
    assert feats.dtype == images.dtype

    print("KERNEL_OK")
</pallas_src>

<mosaic_0001>
module attributes {stable_mosaic.version = 11 : i64} {
  func.func @_tower_kernel(%arg0: i32, %arg1: i32, %arg2: memref<1x4x192xbf16, #tpu.memory_space<vmem>>, %arg3: memref<192x32xbf16, #tpu.memory_space<vmem>>, %arg4: memref<1x32xbf16, #tpu.memory_space<vmem>>, %arg5: memref<4x32xbf16, #tpu.memory_space<vmem>>, %arg6: memref<1x32xf32, #tpu.memory_space<vmem>>, %arg7: memref<1x32xf32, #tpu.memory_space<vmem>>, %arg8: memref<1x1x32xf32, #tpu.memory_space<vmem>>, %arg9: memref<1x1x32xf32, #tpu.memory_space<vmem>>, %arg10: memref<1x32x96xbf16, #tpu.memory_space<vmem>>, %arg11: memref<1x1x96xf32, #tpu.memory_space<vmem>>, %arg12: memref<1x32x32xbf16, #tpu.memory_space<vmem>>, %arg13: memref<1x1x32xf32, #tpu.memory_space<vmem>>, %arg14: memref<1x1x32xf32, #tpu.memory_space<vmem>>, %arg15: memref<1x1x32xf32, #tpu.memory_space<vmem>>, %arg16: memref<1x32x64xbf16, #tpu.memory_space<vmem>>, %arg17: memref<1x1x64xf32, #tpu.memory_space<vmem>>, %arg18: memref<1x64x32xbf16, #tpu.memory_space<vmem>>, %arg19: memref<1x1x32xf32, #tpu.memory_space<vmem>>, %arg20: memref<1x4x32xf32, #tpu.memory_space<vmem>>, %arg21: memref<8x32xf32, #tpu.memory_space<vmem>>) attributes {dimension_semantics = [#tpu.dimension_semantics<parallel>, #tpu.dimension_semantics<arbitrary>], iteration_bounds = array<i64: 2, 2>, scalar_prefetch = 0 : i64, scratch_operands = 1 : i64, tpu.core_type = #tpu.core_type<tc>, window_params = [{transform_indices = @transform_0, window_bounds = array<i64: 1, 4, 192>}, {pipeline_mode = #tpu.pipeline_mode<synchronous>, transform_indices = @transform_1, window_bounds = array<i64: 192, 32>}, {pipeline_mode = #tpu.pipeline_mode<synchronous>, transform_indices = @transform_2, window_bounds = array<i64: 1, 32>}, {pipeline_mode = #tpu.pipeline_mode<synchronous>, transform_indices = @transform_3, window_bounds = array<i64: 4, 32>}, {pipeline_mode = #tpu.pipeline_mode<synchronous>, transform_indices = @transform_4, window_bounds = array<i64: 1, 32>}, {pipeline_mode = #tpu.pipeline_mode<synchronous>, transform_indices = @transform_5, window_bounds = array<i64: 1, 32>}, {transform_indices = @transform_6, window_bounds = array<i64: 1, 1, 32>}, {transform_indices = @transform_7, window_bounds = array<i64: 1, 1, 32>}, {transform_indices = @transform_8, window_bounds = array<i64: 1, 32, 96>}, {transform_indices = @transform_9, window_bounds = array<i64: 1, 1, 96>}, {transform_indices = @transform_10, window_bounds = array<i64: 1, 32, 32>}, {transform_indices = @transform_11, window_bounds = array<i64: 1, 1, 32>}, {transform_indices = @transform_12, window_bounds = array<i64: 1, 1, 32>}, {transform_indices = @transform_13, window_bounds = array<i64: 1, 1, 32>}, {transform_indices = @transform_14, window_bounds = array<i64: 1, 32, 64>}, {transform_indices = @transform_15, window_bounds = array<i64: 1, 1, 64>}, {transform_indices = @transform_16, window_bounds = array<i64: 1, 64, 32>}, {transform_indices = @transform_17, window_bounds = array<i64: 1, 1, 32>}, {transform_indices = @transform_18, window_bounds = array<i64: 1, 4, 32>}]} {
    %c0_i32 = arith.constant 0 : i32
    %0 = arith.cmpi eq, %arg1, %c0_i32 : i32
    %1 = arith.extui %0 : i1 to i32
    %c0_i32_0 = arith.constant 0 : i32
    %2 = arith.cmpi ne, %1, %c0_i32_0 : i32
    scf.if %2 {
      %c0_74 = arith.constant 0 : index
      %c0_75 = arith.constant 0 : index
      %c0_76 = arith.constant 0 : index
      %193 = vector.load %arg2[%c0_74, %c0_75, %c0_76] : memref<1x4x192xbf16, #tpu.memory_space<vmem>>, vector<1x4x192xbf16>
      %194 = vector.shape_cast %193 : vector<1x4x192xbf16> to vector<4x192xbf16>
      %c0_77 = arith.constant 0 : index
      %c0_78 = arith.constant 0 : index
      %195 = vector.load %arg3[%c0_77, %c0_78] : memref<192x32xbf16, #tpu.memory_space<vmem>>, vector<192x32xbf16>
      %cst_79 = arith.constant dense<0.000000e+00> : vector<4x32xf32>
      %196 = tpu.matmul %194, %195, %cst_79 {dimension_numbers = #tpu.dot_dimension_numbers<[1], [0], [0], [1], [0, 0, 1, 1], [], []>} : vector<4x192xbf16>, vector<192x32xbf16>, vector<4x32xf32> -> vector<4x32xf32>
      %c0_80 = arith.constant 0 : index
      %c0_81 = arith.constant 0 : index
      %197 = vector.load %arg5[%c0_80, %c0_81] : memref<4x32xbf16, #tpu.memory_space<vmem>>, vector<4x32xbf16>
      %198 = arith.extf %197 : vector<4x32xbf16> to vector<4x32xf32>
      %199 = arith.addf %196, %198 : vector<4x32xf32>
      %c0_82 = arith.constant 0 : index
      %c0_83 = arith.constant 0 : index
      %200 = vector.load %arg4[%c0_82, %c0_83] : memref<1x32xbf16, #tpu.memory_space<vmem>>, vector<1x32xbf16>
      %201 = arith.extf %200 : vector<1x32xbf16> to vector<1x32xf32>
      %cst_84 = arith.constant 0.000000e+00 : f32
      %202 = vector.broadcast %cst_84 : f32 to vector<3x32xf32>
      %203 = tpu.concatenate %201, %199, %202 in 0 : vector<1x32xf32>, vector<4x32xf32>, vector<3x32xf32> -> vector<8x32xf32>
      %c0_85 = arith.constant 0 : index
      %c0_86 = arith.constant 0 : index
      %204 = vector.load %arg6[%c0_85, %c0_86] : memref<1x32xf32, #tpu.memory_space<vmem>>, vector<1x32xf32>
      %c0_87 = arith.constant 0 : index
      %c0_88 = arith.constant 0 : index
      %205 = vector.load %arg7[%c0_87, %c0_88] : memref<1x32xf32, #tpu.memory_space<vmem>>, vector<1x32xf32>
      %cst_89 = arith.constant dense<0.000000e+00> : vector<8xf32>
      %206 = vector.multi_reduction <add>, %203, %cst_89 [1] : vector<8x32xf32> to vector<8xf32>
      %207 = vector.shape_cast %206 : vector<8xf32> to vector<8x1xf32>
      %cst_90 = arith.constant 3.200000e+01 : f32
      %208 = vector.broadcast %cst_90 : f32 to vector<8x1xf32>
      %209 = arith.divf %207, %208 : vector<8x1xf32>
      %210 = vector.broadcast %209 : vector<8x1xf32> to vector<8x32xf32>
      %211 = arith.subf %203, %210 : vector<8x32xf32>
      %212 = arith.mulf %211, %211 : vector<8x32xf32>
      %cst_91 = arith.constant dense<0.000000e+00> : vector<8xf32>
      %213 = vector.multi_reduction <add>, %212, %cst_91 [1] : vector<8x32xf32> to vector<8xf32>
      %214 = vector.shape_cast %213 : vector<8xf32> to vector<8x1xf32>
      %cst_92 = arith.constant 3.200000e+01 : f32
      %215 = vector.broadcast %cst_92 : f32 to vector<8x1xf32>
      %216 = arith.divf %214, %215 : vector<8x1xf32>
      %217 = vector.broadcast %209 : vector<8x1xf32> to vector<8x32xf32>
      %218 = arith.subf %203, %217 : vector<8x32xf32>
      %cst_93 = arith.constant 9.99999974E-6 : f32
      %219 = vector.broadcast %cst_93 : f32 to vector<8x1xf32>
      %220 = arith.addf %216, %219 : vector<8x1xf32>
      %221 = math.rsqrt %220 : vector<8x1xf32>
      %222 = vector.broadcast %221 : vector<8x1xf32> to vector<8x32xf32>
      %223 = arith.mulf %218, %222 : vector<8x32xf32>
      %224 = vector.broadcast %204 : vector<1x32xf32> to vector<8x32xf32>
      %225 = arith.mulf %223, %224 : vector<8x32xf32>
      %226 = vector.broadcast %205 : vector<1x32xf32> to vector<8x32xf32>
      %227 = arith.addf %225, %226 : vector<8x32xf32>
      %c0_94 = arith.constant 0 : index
      %c0_95 = arith.constant 0 : index
      %228 = vector.load %arg21[%c0_94, %c0_95] : memref<8x32xf32, #tpu.memory_space<vmem>>, vector<8x32xf32>
      tpu.vector_store %arg21[%c0_94, %c0_95], %227 {strides = array<i32>} : memref<8x32xf32, #tpu.memory_space<vmem>>, vector<8x32xf32>,
    } else {
    }
    %c0 = arith.constant 0 : index
    %c0_1 = arith.constant 0 : index
    %3 = vector.load %arg21[%c0, %c0_1] : memref<8x32xf32, #tpu.memory_space<vmem>>, vector<8x32xf32>
    %4 = tpu.iota {dimensions = array<i32: 1>} : vector<1x8xi32>
    %c5_i32 = arith.constant 5 : i32
    %5 = vector.broadcast %c5_i32 : i32 to vector<1x8xi32>
    %6 = arith.cmpi slt, %4, %5 : vector<1x8xi32>
    %cst = arith.constant 0.000000e+00 : f32
    %cst_2 = arith.constant -1.000000e+30 : f32
    %7 = vector.broadcast %cst : f32 to vector<1x8xf32>
    %8 = vector.broadcast %cst_2 : f32 to vector<1x8xf32>
    %9 = arith.select %6, %7, %8 : vector<1x8xi1>, vector<1x8xf32>
    %c0_3 = arith.constant 0 : index
    %c0_4 = arith.constant 0 : index
    %c0_5 = arith.constant 0 : index
    %10 = vector.load %arg8[%c0_3, %c0_4, %c0_5] : memref<1x1x32xf32, #tpu.memory_space<vmem>>, vector<1x1x32xf32>
    %11 = vector.shape_cast %10 : vector<1x1x32xf32> to vector<1x32xf32>
    %c0_6 = arith.constant 0 : index
    %c0_7 = arith.constant 0 : index
    %c0_8 = arith.constant 0 : index
    %12 = vector.load %arg9[%c0_6, %c0_7, %c0_8] : memref<1x1x32xf32, #tpu.memory_space<vmem>>, vector<1x1x32xf32>
    %13 = vector.shape_cast %12 : vector<1x1x32xf32> to vector<1x32xf32>
    %cst_9 = arith.constant dense<0.000000e+00> : vector<8xf32>
    %14 = vector.multi_reduction <add>, %3, %cst_9 [1] : vector<8x32xf32> to vector<8xf32>
    %15 = vector.shape_cast %14 : vector<8xf32> to vector<8x1xf32>
    %cst_10 = arith.constant 3.200000e+01 : f32
    %16 = vector.broadcast %cst_10 : f32 to vector<8x1xf32>
    %17 = arith.divf %15, %16 : vector<8x1xf32>
    %18 = vector.broadcast %17 : vector<8x1xf32> to vector<8x32xf32>
    %19 = arith.subf %3, %18 : vector<8x32xf32>
    %20 = arith.mulf %19, %19 : vector<8x32xf32>
    %cst_11 = arith.constant dense<0.000000e+00> : vector<8xf32>
    %21 = vector.multi_reduction <add>, %20, %cst_11 [1] : vector<8x32xf32> to vector<8xf32>
    %22 = vector.shape_cast %21 : vector<8xf32> to vector<8x1xf32>
    %cst_12 = arith.constant 3.200000e+01 : f32
    %23 = vector.broadcast %cst_12 : f32 to vector<8x1xf32>
    %24 = arith.divf %22, %23 : vector<8x1xf32>
    %25 = vector.broadcast %17 : vector<8x1xf32> to vector<8x32xf32>
    %26 = arith.subf %3, %25 : vector<8x32xf32>
    %cst_13 = arith.constant 9.99999974E-6 : f32
    %27 = vector.broadcast %cst_13 : f32 to vector<8x1xf32>
    %28 = arith.addf %24, %27 : vector<8x1xf32>
    %29 = math.rsqrt %28 : vector<8x1xf32>
    %30 = vector.broadcast %29 : vector<8x1xf32> to vector<8x32xf32>
    %31 = arith.mulf %26, %30 : vector<8x32xf32>
    %32 = vector.broadcast %11 : vector<1x32xf32> to vector<8x32xf32>
    %33 = arith.mulf %31, %32 : vector<8x32xf32>
    %34 = vector.broadcast %13 : vector<1x32xf32> to vector<8x32xf32>
    %35 = arith.addf %33, %34 : vector<8x32xf32>
    %36 = arith.truncf %35 : vector<8x32xf32> to vector<8x32xbf16>
    %c0_14 = arith.constant 0 : index
    %c0_15 = arith.constant 0 : index
    %c0_16 = arith.constant 0 : index
    %37 = vector.load %arg10[%c0_14, %c0_15, %c0_16] : memref<1x32x96xbf16, #tpu.memory_space<vmem>>, vector<1x32x96xbf16>
    %38 = vector.shape_cast %37 : vector<1x32x96xbf16> to vector<32x96xbf16>
    %cst_17 = arith.constant dense<0.000000e+00> : vector<8x96xf32>
    %39 = tpu.matmul %36, %38, %cst_17 {dimension_numbers = #tpu.dot_dimension_numbers<[1], [0], [0], [1], [0, 0, 1, 1], [], []>} : vector<8x32xbf16>, vector<32x96xbf16>, vector<8x96xf32> -> vector<8x96xf32>
    %c0_18 = arith.constant 0 : index
    %c0_19 = arith.constant 0 : index
    %c0_20 = arith.constant 0 : index
    %40 = vector.load %arg11[%c0_18, %c0_19, %c0_20] : memref<1x1x96xf32, #tpu.memory_space<vmem>>, vector<1x1x96xf32>
    %41 = vector.shape_cast %40 : vector<1x1x96xf32> to vector<1x96xf32>
    %42 = vector.broadcast %41 : vector<1x96xf32> to vector<8x96xf32>
    %43 = arith.addf %39, %42 : vector<8x96xf32>
    %44 = vector.extract_strided_slice %43 {offsets = [0, 0], sizes = [8, 8], strides = [1, 1]} : vector<8x96xf32> to vector<8x8xf32>
    %45 = vector.extract_strided_slice %43 {offsets = [0, 32], sizes = [8, 8], strides = [1, 1]} : vector<8x96xf32> to vector<8x8xf32>
    %46 = vector.extract_strided_slice %43 {offsets = [0, 64], sizes = [8, 8], strides = [1, 1]} : vector<8x96xf32> to vector<8x8xf32>
    %47 = arith.truncf %44 : vector<8x8xf32> to vector<8x8xbf16>
    %48 = arith.truncf %45 : vector<8x8xf32> to vector<8x8xbf16>
    "tpu.trace_start"() <{level = 10 : i32, message = "qd,kd->qk"}> : () -> ()
    %cst_21 = arith.constant dense<0.000000e+00> : vector<8x8xf32>
    %49 = tpu.matmul %47, %48, %cst_21 {dimension_numbers = #tpu.dot_dimension_numbers<[1], [1], [0], [0], [0, 0, 1, 0], [], []>} : vector<8x8xbf16>, vector<8x8xbf16>, vector<8x8xf32> -> vector<8x8xf32>
    "tpu.trace_stop"() : () -> ()
    %50 = vector.broadcast %9 : vector<1x8xf32> to vector<8x8xf32>
    %51 = arith.addf %49, %50 : vector<8x8xf32>
    %cst_22 = arith.constant dense<0xFF800000> : vector<8xf32>
    %52 = vector.multi_reduction <maximumf>, %51, %cst_22 [1] : vector<8x8xf32> to vector<8xf32>
    %53 = vector.shape_cast %52 : vector<8xf32> to vector<8x1xf32>
    %54 = vector.broadcast %53 : vector<8x1xf32> to vector<8x8xf32>
    %55 = arith.subf %51, %54 : vector<8x8xf32>
    %56 = math.exp %55 : vector<8x8xf32>
    %cst_23 = arith.constant dense<0.000000e+00> : vector<8xf32>
    %57 = vector.multi_reduction <add>, %56, %cst_23 [1] : vector<8x8xf32> to vector<8xf32>
    %58 = vector.shape_cast %57 : vector<8xf32> to vector<8x1xf32>
    %59 = tpu.reciprocal %58 {approx = true} : vector<8x1xf32> -> vector<8x1xf32>
    %60 = vector.broadcast %59 : vector<8x1xf32> to vector<8x8xf32>
    %61 = arith.mulf %56, %60 : vector<8x8xf32>
    %62 = arith.truncf %61 : vector<8x8xf32> to vector<8x8xbf16>
    %63 = arith.truncf %46 : vector<8x8xf32> to vector<8x8xbf16>
    %cst_24 = arith.constant dense<0.000000e+00> : vector<8x8xf32>
    %64 = tpu.matmul %62, %63, %cst_24 {dimension_numbers = #tpu.dot_dimension_numbers<[1], [0], [0], [1], [0, 0, 1, 1], [], []>} : vector<8x8xbf16>, vector<8x8xbf16>, vector<8x8xf32> -> vector<8x8xf32>
    %65 = vector.extract_strided_slice %43 {offsets = [0, 8], sizes = [8, 8], strides = [1, 1]} : vector<8x96xf32> to vector<8x8xf32>
    %66 = vector.extract_strided_slice %43 {offsets = [0, 40], sizes = [8, 8], strides = [1, 1]} : vector<8x96xf32> to vector<8x8xf32>
    %67 = vector.extract_strided_slice %43 {offsets = [0, 72], sizes = [8, 8], strides = [1, 1]} : vector<8x96xf32> to vector<8x8xf32>
    %68 = arith.truncf %65 : vector<8x8xf32> to vector<8x8xbf16>
    %69 = arith.truncf %66 : vector<8x8xf32> to vector<8x8xbf16>
    "tpu.trace_start"() <{level = 10 : i32, message = "qd,kd->qk"}> : () -> ()
    %cst_25 = arith.constant dense<0.000000e+00> : vector<8x8xf32>
    %70 = tpu.matmul %68, %69, %cst_25 {dimension_numbers = #tpu.dot_dimension_numbers<[1], [1], [0], [0], [0, 0, 1, 0], [], []>} : vector<8x8xbf16>, vector<8x8xbf16>, vector<8x8xf32> -> vector<8x8xf32>
    "tpu.trace_stop"() : () -> ()
    %71 = vector.broadcast %9 : vector<1x8xf32> to vector<8x8xf32>
    %72 = arith.addf %70, %71 : vector<8x8xf32>
    %cst_26 = arith.constant dense<0xFF800000> : vector<8xf32>
    %73 = vector.multi_reduction <maximumf>, %72, %cst_26 [1] : vector<8x8xf32> to vector<8xf32>
    %74 = vector.shape_cast %73 : vector<8xf32> to vector<8x1xf32>
    %75 = vector.broadcast %74 : vector<8x1xf32> to vector<8x8xf32>
    %76 = arith.subf %72, %75 : vector<8x8xf32>
    %77 = math.exp %76 : vector<8x8xf32>
    %cst_27 = arith.constant dense<0.000000e+00> : vector<8xf32>
    %78 = vector.multi_reduction <add>, %77, %cst_27 [1] : vector<8x8xf32> to vector<8xf32>
    %79 = vector.shape_cast %78 : vector<8xf32> to vector<8x1xf32>
    %80 = tpu.reciprocal %79 {approx = true} : vector<8x1xf32> -> vector<8x1xf32>
    %81 = vector.broadcast %80 : vector<8x1xf32> to vector<8x8xf32>
    %82 = arith.mulf %77, %81 : vector<8x8xf32>
    %83 = arith.truncf %82 : vector<8x8xf32> to vector<8x8xbf16>
    %84 = arith.truncf %67 : vector<8x8xf32> to vector<8x8xbf16>
    %cst_28 = arith.constant dense<0.000000e+00> : vector<8x8xf32>
    %85 = tpu.matmul %83, %84, %cst_28 {dimension_numbers = #tpu.dot_dimension_numbers<[1], [0], [0], [1], [0, 0, 1, 1], [], []>} : vector<8x8xbf16>, vector<8x8xbf16>, vector<8x8xf32> -> vector<8x8xf32>
    %86 = vector.extract_strided_slice %43 {offsets = [0, 16], sizes = [8, 8], strides = [1, 1]} : vector<8x96xf32> to vector<8x8xf32>
    %87 = vector.extract_strided_slice %43 {offsets = [0, 48], sizes = [8, 8], strides = [1, 1]} : vector<8x96xf32> to vector<8x8xf32>
    %88 = vector.extract_strided_slice %43 {offsets = [0, 80], sizes = [8, 8], strides = [1, 1]} : vector<8x96xf32> to vector<8x8xf32>
    %89 = arith.truncf %86 : vector<8x8xf32> to vector<8x8xbf16>
    %90 = arith.truncf %87 : vector<8x8xf32> to vector<8x8xbf16>
    "tpu.trace_start"() <{level = 10 : i32, message = "qd,kd->qk"}> : () -> ()
    %cst_29 = arith.constant dense<0.000000e+00> : vector<8x8xf32>
    %91 = tpu.matmul %89, %90, %cst_29 {dimension_numbers = #tpu.dot_dimension_numbers<[1], [1], [0], [0], [0, 0, 1, 0], [], []>} : vector<8x8xbf16>, vector<8x8xbf16>, vector<8x8xf32> -> vector<8x8xf32>
    "tpu.trace_stop"() : () -> ()
    %92 = vector.broadcast %9 : vector<1x8xf32> to vector<8x8xf32>
    %93 = arith.addf %91, %92 : vector<8x8xf32>
    %cst_30 = arith.constant dense<0xFF800000> : vector<8xf32>
    %94 = vector.multi_reduction <maximumf>, %93, %cst_30 [1] : vector<8x8xf32> to vector<8xf32>
    %95 = vector.shape_cast %94 : vector<8xf32> to vector<8x1xf32>
    %96 = vector.broadcast %95 : vector<8x1xf32> to vector<8x8xf32>
    %97 = arith.subf %93, %96 : vector<8x8xf32>
    %98 = math.exp %97 : vector<8x8xf32>
    %cst_31 = arith.constant dense<0.000000e+00> : vector<8xf32>
    %99 = vector.multi_reduction <add>, %98, %cst_31 [1] : vector<8x8xf32> to vector<8xf32>
    %100 = vector.shape_cast %99 : vector<8xf32> to vector<8x1xf32>
    %101 = tpu.reciprocal %100 {approx = true} : vector<8x1xf32> -> vector<8x1xf32>
    %102 = vector.broadcast %101 : vector<8x1xf32> to vector<8x8xf32>
    %103 = arith.mulf %98, %102 : vector<8x8xf32>
    %104 = arith.truncf %103 : vector<8x8xf32> to vector<8x8xbf16>
    %105 = arith.truncf %88 : vector<8x8xf32> to vector<8x8xbf16>
    %cst_32 = arith.constant dense<0.000000e+00> : vector<8x8xf32>
    %106 = tpu.matmul %104, %105, %cst_32 {dimension_numbers = #tpu.dot_dimension_numbers<[1], [0], [0], [1], [0, 0, 1, 1], [], []>} : vector<8x8xbf16>, vector<8x8xbf16>, vector<8x8xf32> -> vector<8x8xf32>
    %107 = vector.extract_strided_slice %43 {offsets = [0, 24], sizes = [8, 8], strides = [1, 1]} : vector<8x96xf32> to vector<8x8xf32>
    %108 = vector.extract_strided_slice %43 {offsets = [0, 56], sizes = [8, 8], strides = [1, 1]} : vector<8x96xf32> to vector<8x8xf32>
    %109 = vector.extract_strided_slice %43 {offsets = [0, 88], sizes = [8, 8], strides = [1, 1]} : vector<8x96xf32> to vector<8x8xf32>
    %110 = arith.truncf %107 : vector<8x8xf32> to vector<8x8xbf16>
    %111 = arith.truncf %108 : vector<8x8xf32> to vector<8x8xbf16>
    "tpu.trace_start"() <{level = 10 : i32, message = "qd,kd->qk"}> : () -> ()
    %cst_33 = arith.constant dense<0.000000e+00> : vector<8x8xf32>
    %112 = tpu.matmul %110, %111, %cst_33 {dimension_numbers = #tpu.dot_dimension_numbers<[1], [1], [0], [0], [0, 0, 1, 0], [], []>} : vector<8x8xbf16>, vector<8x8xbf16>, vector<8x8xf32> -> vector<8x8xf32>
    "tpu.trace_stop"() : () -> ()
    %113 = vector.broadcast %9 : vector<1x8xf32> to vector<8x8xf32>
    %114 = arith.addf %112, %113 : vector<8x8xf32>
    %cst_34 = arith.constant dense<0xFF800000> : vector<8xf32>
    %115 = vector.multi_reduction <maximumf>, %114, %cst_34 [1] : vector<8x8xf32> to vector<8xf32>
    %116 = vector.shape_cast %115 : vector<8xf32> to vector<8x1xf32>
    %117 = vector.broadcast %116 : vector<8x1xf32> to vector<8x8xf32>
    %118 = arith.subf %114, %117 : vector<8x8xf32>
    %119 = math.exp %118 : vector<8x8xf32>
    %cst_35 = arith.constant dense<0.000000e+00> : vector<8xf32>
    %120 = vector.multi_reduction <add>, %119, %cst_35 [1] : vector<8x8xf32> to vector<8xf32>
    %121 = vector.shape_cast %120 : vector<8xf32> to vector<8x1xf32>
    %122 = tpu.reciprocal %121 {approx = true} : vector<8x1xf32> -> vector<8x1xf32>
    %123 = vector.broadcast %122 : vector<8x1xf32> to vector<8x8xf32>
    %124 = arith.mulf %119, %123 : vector<8x8xf32>
    %125 = arith.truncf %124 : vector<8x8xf32> to vector<8x8xbf16>
    %126 = arith.truncf %109 : vector<8x8xf32> to vector<8x8xbf16>
    %cst_36 = arith.constant dense<0.000000e+00> : vector<8x8xf32>
    %127 = tpu.matmul %125, %126, %cst_36 {dimension_numbers = #tpu.dot_dimension_numbers<[1], [0], [0], [1], [0, 0, 1, 1], [], []>} : vector<8x8xbf16>, vector<8x8xbf16>, vector<8x8xf32> -> vector<8x8xf32>
    %128 = tpu.concatenate %64, %85, %106, %127 in 1 : vector<8x8xf32>, vector<8x8xf32>, vector<8x8xf32>, vector<8x8xf32> -> vector<8x32xf32>
    %129 = arith.truncf %128 : vector<8x32xf32> to vector<8x32xbf16>
    %c0_37 = arith.constant 0 : index
    %c0_38 = arith.constant 0 : index
    %c0_39 = arith.constant 0 : index
    %130 = vector.load %arg12[%c0_37, %c0_38, %c0_39] : memref<1x32x32xbf16, #tpu.memory_space<vmem>>, vector<1x32x32xbf16>
    %131 = vector.shape_cast %130 : vector<1x32x32xbf16> to vector<32x32xbf16>
    %cst_40 = arith.constant dense<0.000000e+00> : vector<8x32xf32>
    %132 = tpu.matmul %129, %131, %cst_40 {dimension_numbers = #tpu.dot_dimension_numbers<[1], [0], [0], [1], [0, 0, 1, 1], [], []>} : vector<8x32xbf16>, vector<32x32xbf16>, vector<8x32xf32> -> vector<8x32xf32>
    %c0_41 = arith.constant 0 : index
    %c0_42 = arith.constant 0 : index
    %c0_43 = arith.constant 0 : index
    %133 = vector.load %arg13[%c0_41, %c0_42, %c0_43] : memref<1x1x32xf32, #tpu.memory_space<vmem>>, vector<1x1x32xf32>
    %134 = vector.shape_cast %133 : vector<1x1x32xf32> to vector<1x32xf32>
    %135 = vector.broadcast %134 : vector<1x32xf32> to vector<8x32xf32>
    %136 = arith.addf %132, %135 : vector<8x32xf32>
    %137 = arith.addf %3, %136 : vector<8x32xf32>
    %c0_44 = arith.constant 0 : index
    %c0_45 = arith.constant 0 : index
    %c0_46 = arith.constant 0 : index
    %138 = vector.load %arg14[%c0_44, %c0_45, %c0_46] : memref<1x1x32xf32, #tpu.memory_space<vmem>>, vector<1x1x32xf32>
    %139 = vector.shape_cast %138 : vector<1x1x32xf32> to vector<1x32xf32>
    %c0_47 = arith.constant 0 : index
    %c0_48 = arith.constant 0 : index
    %c0_49 = arith.constant 0 : index
    %140 = vector.load %arg15[%c0_47, %c0_48, %c0_49] : memref<1x1x32xf32, #tpu.memory_space<vmem>>, vector<1x1x32xf32>
    %141 = vector.shape_cast %140 : vector<1x1x32xf32> to vector<1x32xf32>
    %cst_50 = arith.constant dense<0.000000e+00> : vector<8xf32>
    %142 = vector.multi_reduction <add>, %137, %cst_50 [1] : vector<8x32xf32> to vector<8xf32>
    %143 = vector.shape_cast %142 : vector<8xf32> to vector<8x1xf32>
    %cst_51 = arith.constant 3.200000e+01 : f32
    %144 = vector.broadcast %cst_51 : f32 to vector<8x1xf32>
    %145 = arith.divf %143, %144 : vector<8x1xf32>
    %146 = vector.broadcast %145 : vector<8x1xf32> to vector<8x32xf32>
    %147 = arith.subf %137, %146 : vector<8x32xf32>
    %148 = arith.mulf %147, %147 : vector<8x32xf32>
    %cst_52 = arith.constant dense<0.000000e+00> : vector<8xf32>
    %149 = vector.multi_reduction <add>, %148, %cst_52 [1] : vector<8x32xf32> to vector<8xf32>
    %150 = vector.shape_cast %149 : vector<8xf32> to vector<8x1xf32>
    %cst_53 = arith.constant 3.200000e+01 : f32
    %151 = vector.broadcast %cst_53 : f32 to vector<8x1xf32>
    %152 = arith.divf %150, %151 : vector<8x1xf32>
    %153 = vector.broadcast %145 : vector<8x1xf32> to vector<8x32xf32>
    %154 = arith.subf %137, %153 : vector<8x32xf32>
    %cst_54 = arith.constant 9.99999974E-6 : f32
    %155 = vector.broadcast %cst_54 : f32 to vector<8x1xf32>
    %156 = arith.addf %152, %155 : vector<8x1xf32>
    %157 = math.rsqrt %156 : vector<8x1xf32>
    %158 = vector.broadcast %157 : vector<8x1xf32> to vector<8x32xf32>
    %159 = arith.mulf %154, %158 : vector<8x32xf32>
    %160 = vector.broadcast %139 : vector<1x32xf32> to vector<8x32xf32>
    %161 = arith.mulf %159, %160 : vector<8x32xf32>
    %162 = vector.broadcast %141 : vector<1x32xf32> to vector<8x32xf32>
    %163 = arith.addf %161, %162 : vector<8x32xf32>
    %164 = arith.truncf %163 : vector<8x32xf32> to vector<8x32xbf16>
    %c0_55 = arith.constant 0 : index
    %c0_56 = arith.constant 0 : index
    %c0_57 = arith.constant 0 : index
    %165 = vector.load %arg16[%c0_55, %c0_56, %c0_57] : memref<1x32x64xbf16, #tpu.memory_space<vmem>>, vector<1x32x64xbf16>
    %166 = vector.shape_cast %165 : vector<1x32x64xbf16> to vector<32x64xbf16>
    %cst_58 = arith.constant dense<0.000000e+00> : vector<8x64xf32>
    %167 = tpu.matmul %164, %166, %cst_58 {dimension_numbers = #tpu.dot_dimension_numbers<[1], [0], [0], [1], [0, 0, 1, 1], [], []>} : vector<8x32xbf16>, vector<32x64xbf16>, vector<8x64xf32> -> vector<8x64xf32>
    %c0_59 = arith.constant 0 : index
    %c0_60 = arith.constant 0 : index
    %c0_61 = arith.constant 0 : index
    %168 = vector.load %arg17[%c0_59, %c0_60, %c0_61] : memref<1x1x64xf32, #tpu.memory_space<vmem>>, vector<1x1x64xf32>
    %169 = vector.shape_cast %168 : vector<1x1x64xf32> to vector<1x64xf32>
    %170 = vector.broadcast %169 : vector<1x64xf32> to vector<8x64xf32>
    %171 = arith.addf %167, %170 : vector<8x64xf32>
    %cst_62 = arith.constant 1.702000e+00 : f32
    %172 = vector.broadcast %cst_62 : f32 to vector<8x64xf32>
    %173 = arith.mulf %172, %171 : vector<8x64xf32>
    %174 = arith.negf %173 : vector<8x64xf32>
    %175 = math.exp %174 : vector<8x64xf32>
    %cst_63 = arith.constant 1.000000e+00 : f32
    %176 = vector.broadcast %cst_63 : f32 to vector<8x64xf32>
    %177 = arith.addf %176, %175 : vector<8x64xf32>
    %178 = arith.divf %176, %177 : vector<8x64xf32>
    %179 = arith.mulf %171, %178 : vector<8x64xf32>
    %180 = arith.truncf %179 : vector<8x64xf32> to vector<8x64xbf16>
    %c0_64 = arith.constant 0 : index
    %c0_65 = arith.constant 0 : index
    %c0_66 = arith.constant 0 : index
    %181 = vector.load %arg18[%c0_64, %c0_65, %c0_66] : memref<1x64x32xbf16, #tpu.memory_space<vmem>>, vector<1x64x32xbf16>
    %182 = vector.shape_cast %181 : vector<1x64x32xbf16> to vector<64x32xbf16>
    %cst_67 = arith.constant dense<0.000000e+00> : vector<8x32xf32>
    %183 = tpu.matmul %180, %182, %cst_67 {dimension_numbers = #tpu.dot_dimension_numbers<[1], [0], [0], [1], [0, 0, 1, 1], [], []>} : vector<8x64xbf16>, vector<64x32xbf16>, vector<8x32xf32> -> vector<8x32xf32>
    %c0_68 = arith.constant 0 : index
    %c0_69 = arith.constant 0 : index
    %c0_70 = arith.constant 0 : index
    %184 = vector.load %arg19[%c0_68, %c0_69, %c0_70] : memref<1x1x32xf32, #tpu.memory_space<vmem>>, vector<1x1x32xf32>
    %185 = vector.shape_cast %184 : vector<1x1x32xf32> to vector<1x32xf32>
    %186 = vector.broadcast %185 : vector<1x32xf32> to vector<8x32xf32>
    %187 = arith.addf %183, %186 : vector<8x32xf32>
    %188 = arith.addf %137, %187 : vector<8x32xf32>
    %c0_71 = arith.constant 0 : index
    %c0_72 = arith.constant 0 : index
    %189 = vector.load %arg21[%c0_71, %c0_72] : memref<8x32xf32, #tpu.memory_space<vmem>>, vector<8x32xf32>
    tpu.vector_store %arg21[%c0_71, %c0_72], %188 {strides = array<i32>} : memref<8x32xf32, #tpu.memory_space<vmem>>, vector<8x32xf32>,
    %c1_i32 = arith.constant 1 : i32
    %190 = arith.cmpi eq, %arg1, %c1_i32 : i32
    %191 = arith.extui %190 : i1 to i32
    %c0_i32_73 = arith.constant 0 : i32
    %192 = arith.cmpi ne, %191, %c0_i32_73 : i32
    scf.if %192 {
      %193 = vector.extract_strided_slice %188 {offsets = [1, 0], sizes = [4, 32], strides = [1, 1]} : vector<8x32xf32> to vector<4x32xf32>
      %194 = vector.shape_cast %193 : vector<4x32xf32> to vector<1x4x32xf32>
      %c0_74 = arith.constant 0 : index
      %c0_75 = arith.constant 0 : index
      %c0_76 = arith.constant 0 : index
      %195 = vector.load %arg20[%c0_74, %c0_75, %c0_76] : memref<1x4x32xf32, #tpu.memory_space<vmem>>, vector<1x4x32xf32>
      tpu.vector_store %arg20[%c0_74, %c0_75, %c0_76], %194 {strides = array<i32>} : memref<1x4x32xf32, #tpu.memory_space<vmem>>, vector<1x4x32xf32>,
    } else {
    }
    return
  }
  func.func @transform_0(%arg0: i32, %arg1: i32) -> (i32, i32, i32) {
    %c0_i32 = arith.constant 0 : i32
    %c0_i32_0 = arith.constant 0 : i32
    %c0_i32_1 = arith.constant 0 : i32
    return %arg0, %c0_i32, %c0_i32_0 : i32, i32, i32
  }
  func.func @transform_1(%arg0: i32, %arg1: i32) -> (i32, i32) {
    %c0_i32 = arith.constant 0 : i32
    %c0_i32_0 = arith.constant 0 : i32
    %c0_i32_1 = arith.constant 0 : i32
    return %c0_i32, %c0_i32_0 : i32, i32
  }
  func.func @transform_2(%arg0: i32, %arg1: i32) -> (i32, i32) {
    %c0_i32 = arith.constant 0 : i32
    %c0_i32_0 = arith.constant 0 : i32
    %c0_i32_1 = arith.constant 0 : i32
    return %c0_i32, %c0_i32_0 : i32, i32
  }
  func.func @transform_3(%arg0: i32, %arg1: i32) -> (i32, i32) {
    %c0_i32 = arith.constant 0 : i32
    %c0_i32_0 = arith.constant 0 : i32
    %c0_i32_1 = arith.constant 0 : i32
    return %c0_i32, %c0_i32_0 : i32, i32
  }
  func.func @transform_4(%arg0: i32, %arg1: i32) -> (i32, i32) {
    %c0_i32 = arith.constant 0 : i32
    %c0_i32_0 = arith.constant 0 : i32
    %c0_i32_1 = arith.constant 0 : i32
    return %c0_i32, %c0_i32_0 : i32, i32
  }
  func.func @transform_5(%arg0: i32, %arg1: i32) -> (i32, i32) {
    %c0_i32 = arith.constant 0 : i32
    %c0_i32_0 = arith.constant 0 : i32
    %c0_i32_1 = arith.constant 0 : i32
    return %c0_i32, %c0_i32_0 : i32, i32
  }
  func.func @transform_6(%arg0: i32, %arg1: i32) -> (i32, i32, i32) {
    %c0_i32 = arith.constant 0 : i32
    %c0_i32_0 = arith.constant 0 : i32
    %c0_i32_1 = arith.constant 0 : i32
    return %arg1, %c0_i32, %c0_i32_0 : i32, i32, i32
  }
  func.func @transform_7(%arg0: i32, %arg1: i32) -> (i32, i32, i32) {
    %c0_i32 = arith.constant 0 : i32
    %c0_i32_0 = arith.constant 0 : i32
    %c0_i32_1 = arith.constant 0 : i32
    return %arg1, %c0_i32, %c0_i32_0 : i32, i32, i32
  }
  func.func @transform_8(%arg0: i32, %arg1: i32) -> (i32, i32, i32) {
    %c0_i32 = arith.constant 0 : i32
    %c0_i32_0 = arith.constant 0 : i32
    %c0_i32_1 = arith.constant 0 : i32
    return %arg1, %c0_i32, %c0_i32_0 : i32, i32, i32
  }
  func.func @transform_9(%arg0: i32, %arg1: i32) -> (i32, i32, i32) {
    %c0_i32 = arith.constant 0 : i32
    %c0_i32_0 = arith.constant 0 : i32
    %c0_i32_1 = arith.constant 0 : i32
    return %arg1, %c0_i32, %c0_i32_0 : i32, i32, i32
  }
  func.func @transform_10(%arg0: i32, %arg1: i32) -> (i32, i32, i32) {
    %c0_i32 = arith.constant 0 : i32
    %c0_i32_0 = arith.constant 0 : i32
    %c0_i32_1 = arith.constant 0 : i32
    return %arg1, %c0_i32, %c0_i32_0 : i32, i32, i32
  }
  func.func @transform_11(%arg0: i32, %arg1: i32) -> (i32, i32, i32) {
    %c0_i32 = arith.constant 0 : i32
    %c0_i32_0 = arith.constant 0 : i32
    %c0_i32_1 = arith.constant 0 : i32
    return %arg1, %c0_i32, %c0_i32_0 : i32, i32, i32
  }
  func.func @transform_12(%arg0: i32, %arg1: i32) -> (i32, i32, i32) {
    %c0_i32 = arith.constant 0 : i32
    %c0_i32_0 = arith.constant 0 : i32
    %c0_i32_1 = arith.constant 0 : i32
    return %arg1, %c0_i32, %c0_i32_0 : i32, i32, i32
  }
  func.func @transform_13(%arg0: i32, %arg1: i32) -> (i32, i32, i32) {
    %c0_i32 = arith.constant 0 : i32
    %c0_i32_0 = arith.constant 0 : i32
    %c0_i32_1 = arith.constant 0 : i32
    return %arg1, %c0_i32, %c0_i32_0 : i32, i32, i32
  }
  func.func @transform_14(%arg0: i32, %arg1: i32) -> (i32, i32, i32) {
    %c0_i32 = arith.constant 0 : i32
    %c0_i32_0 = arith.constant 0 : i32
    %c0_i32_1 = arith.constant 0 : i32
    return %arg1, %c0_i32, %c0_i32_0 : i32, i32, i32
  }
  func.func @transform_15(%arg0: i32, %arg1: i32) -> (i32, i32, i32) {
    %c0_i32 = arith.constant 0 : i32
    %c0_i32_0 = arith.constant 0 : i32
    %c0_i32_1 = arith.constant 0 : i32
    return %arg1, %c0_i32, %c0_i32_0 : i32, i32, i32
  }
  func.func @transform_16(%arg0: i32, %arg1: i32) -> (i32, i32, i32) {
    %c0_i32 = arith.constant 0 : i32
    %c0_i32_0 = arith.constant 0 : i32
    %c0_i32_1 = arith.constant 0 : i32
    return %arg1, %c0_i32, %c0_i32_0 : i32, i32, i32
  }
  func.func @transform_17(%arg0: i32, %arg1: i32) -> (i32, i32, i32) {
    %c0_i32 = arith.constant 0 : i32
    %c0_i32_0 = arith.constant 0 : i32
    %c0_i32_1 = arith.constant 0 : i32
    return %arg1, %c0_i32, %c0_i32_0 : i32, i32, i32
  }
  func.func @transform_18(%arg0: i32, %arg1: i32) -> (i32, i32, i32) {
    %c0_i32 = arith.constant 0 : i32
    %c0_i32_0 = arith.constant 0 : i32
    %c0_i32_1 = arith.constant 0 : i32
    return %arg0, %c0_i32, %c0_i32_0 : i32, i32, i32
  }
}

</mosaic_0001>

<llo_original>
// kernel: _lambda_.1
$region0: #{_lambda_.1}
  #allocation0 [shape = 'u32[]', space=smem, size = 0x4, offset = 0x4, fixed_abs, tag = 'smem constant byte address 0x4 - core index']
  #allocation1 [shape = 'u32[72,128]{1,0:T(1,128)}', space=vmem, size = 0x9000, scoped, tag = 'internal scratch']
  #allocation2 [shape = 'f32[8,32]{1,0:T(8,128)}', space=vmem, size = 0x1000, scoped, tag = 'scratch operand']
  %s0 = inlined_call_operand.vmem [shape: bf16[2,4,192], index: 0, kind: input, shape index: {}]
  %s1 = inlined_call_operand.vmem [shape: bf16[192,32], index: 1, kind: input, shape index: {}]
  %s2 = inlined_call_operand.vmem [shape: bf16[1,32], index: 2, kind: input, shape index: {}]
  %s3 = inlined_call_operand.vmem [shape: bf16[4,32], index: 3, kind: input, shape index: {}]
  %s4 = inlined_call_operand.vmem [shape: f32[1,32], index: 4, kind: input, shape index: {}]
  %s5 = inlined_call_operand.vmem [shape: f32[1,32], index: 5, kind: input, shape index: {}]
  %s6 = inlined_call_operand.vmem [shape: f32[2,1,32], index: 6, kind: input, shape index: {}, may-alias: {6,12}]
  %s7 = inlined_call_operand.vmem [shape: f32[2,1,32], index: 7, kind: input, shape index: {}, may-alias: {7,13}]
  %s8 = inlined_call_operand.vmem [shape: bf16[2,32,96], index: 8, kind: input, shape index: {}]
  %s9 = inlined_call_operand.vmem [shape: f32[2,1,96], index: 9, kind: input, shape index: {}]
  %s10 = inlined_call_operand.vmem [shape: bf16[2,32,32], index: 10, kind: input, shape index: {}]
  %s11 = inlined_call_operand.vmem [shape: f32[2,1,32], index: 11, kind: input, shape index: {}]
  %s12 = inlined_call_operand.vmem [shape: f32[2,1,32], index: 12, kind: input, shape index: {}, may-alias: {6,12}]
  %s13 = inlined_call_operand.vmem [shape: f32[2,1,32], index: 13, kind: input, shape index: {}, may-alias: {7,13}]
  %s14 = inlined_call_operand.vmem [shape: bf16[2,32,64], index: 14, kind: input, shape index: {}]
  %s15 = inlined_call_operand.vmem [shape: f32[2,1,64], index: 15, kind: input, shape index: {}]
  %s16 = inlined_call_operand.vmem [shape: bf16[2,64,32], index: 16, kind: input, shape index: {}]
  %s17 = inlined_call_operand.vmem [shape: f32[2,1,32], index: 17, kind: input, shape index: {}]
  %s18 = inlined_call_operand.hbm [shape: f32[2,4,32], index: 18, kind: output, shape index: {}]
  %s19 = sld [smem:[#allocation0]]
  $region113: #{_lambda_.1} parent=0
    _
  %s21 = ssub.s32 1, %s19
  %s22 = scalar_select 0, %s21, %s19
  $region1: #{_lambda_.1} parent=0
    #allocation3 [shape = 'u8[4096]{0}', space=vmem, size = 0x1000, scoped, tag = 'output window, operand 0']
    #allocation4 [shape = 's32[2]{0}', space=sflag, size = 0x8, scoped, tag = 'scoped memory for _lambda_.1']
    %23 = vsyncpa [#allocation4], 0
    %s24 = scalar_lea.sflag [#allocation4], 1
    %25 = vsyncpa %s24, 0
    loop: start=0, step=1, limit=6
    $region2: #{_lambda_.1} parent=1 // loop_pre_header
      _
    $region3: #{_lambda_.1} parent=1 // loop_header
      %s27 = sphi 0, %s31
      %p28 = scmp.ge.s32.totalorder %s27, 6
      %s34 = sphi 0, %s46
      %s35 = sphi 0, %s42
      %s36 = sphi 0, %s34
      %s37 = sphi 0, %s35
      %s38 = sphi 0, %s36
      %s39 = sphi 0, %s37
      %s49 = sphi 0, %s51
      %s52 = sphi 0, %s49
      %s53 = sphi 0, %s52
      %s69 = sphi 0, %s53
      %s73 = sphi 0, %s73
      %s75 = sphi 0, %s73
      %s76 = sphi 0, %s75
      %s90 = sphi 0, %s76
      %s94 = sphi 0, %s94
      %s96 = sphi 0, %s94
      %s97 = sphi 0, %s96
      %s111 = sphi 0, %s97
      %s115 = sphi 0, %s115
      %s117 = sphi 0, %s115
      %s118 = sphi 0, %s117
      %s132 = sphi 0, %s118
      %s136 = sphi 0, %s136
      %s138 = sphi 0, %s136
      %s139 = sphi 0, %s138
      %s153 = sphi 0, %s139
      %s157 = sphi 0, %s157
      %s159 = sphi 0, %s157
      %s160 = sphi 0, %s159
      %s174 = sphi 0, %s160
      %s180 = sphi 0, %s182
      %s183 = sphi 0, %s180
      %s184 = sphi 0, %s183
      %s200 = sphi 0, %s184
      %s206 = sphi 0, %s208
      %s209 = sphi 0, %s206
      %s210 = sphi 0, %s209
      %s226 = sphi 0, %s210
      %s232 = sphi 0, %s234
      %s235 = sphi 0, %s232
      %s236 = sphi 0, %s235
      %s252 = sphi 0, %s236
      %s258 = sphi 0, %s260
      %s261 = sphi 0, %s258
      %s262 = sphi 0, %s261
      %s278 = sphi 0, %s262
      %s284 = sphi 0, %s286
      %s287 = sphi 0, %s284
      %s288 = sphi 0, %s287
      %s304 = sphi 0, %s288
      %s310 = sphi 0, %s312
      %s313 = sphi 0, %s310
      %s314 = sphi 0, %s313
      %s330 = sphi 0, %s314
      %s336 = sphi 0, %s338
      %s339 = sphi 0, %s336
      %s340 = sphi 0, %s339
      %s356 = sphi 0, %s340
      %s362 = sphi 0, %s364
      %s365 = sphi 0, %s362
      %s366 = sphi 0, %s365
      %s382 = sphi 0, %s366
      %s388 = sphi 0, %s390
      %s391 = sphi 0, %s388
      %s392 = sphi 0, %s391
      %s408 = sphi 0, %s392
      %s414 = sphi 0, %s416
      %s417 = sphi 0, %s414
      %s418 = sphi 0, %s417
      %s434 = sphi 0, %s418
      %s440 = sphi 0, %s442
      %s443 = sphi 0, %s440
      %s444 = sphi 0, %s443
      %s460 = sphi 0, %s444
      %s466 = sphi 0, %s468
      %s469 = sphi 0, %s466
      %s470 = sphi 0, %s469
      %s486 = sphi 0, %s470
      %s492 = sphi 0, %s494
      %s495 = sphi 0, %s492
      %s496 = sphi 0, %s495
      %s512 = sphi 0, %s496
    $region4: #{_lambda_.1} parent=1 // loop_header_branch
      %30 = sbr.rel (%p28) target = $region8
    $region5: #{_lambda_.1} parent=1 // loop_body
      %s32 = ssub.s32 %s27, 1
      %s33 = ssub.s32 %s27, 2
      %s40 = sadd.s32 1, %s35
      %p41 = scmp.ge.s32.totalorder %s40, 2
      %s42 = scalar_select %p41, 0, %s40
      %s43 = sadd.s32 1, %s34
      %s44 = scalar_select %p41, %s43, %s34
      %p45 = scmp.ge.s32.totalorder %s44, 2
      %s46 = scalar_select %p45, 0, %s44
      %s47 = ssub.s32 %s34, %s46
      %p48 = scmp.eq.s32.totalorder %s47, 0
      %s50 = sadd.s32 %s49, 1
      %s51 = scalar_select %p48, %s49, %s50
      %p54 = pneg %p48
      %p55 = scmp.eq.s32.totalorder %s27, 3
      %p56 = por %p54, %p55
      %p57 = scmp.ne.s32.totalorder %s49, %s52
      %p58 = scmp.eq.s32.totalorder %s27, 0
      %p59 = por %p57, %p58
      %p60 = scmp.ne.s32.totalorder %s49, %s52
      %p61 = scmp.eq.s32.totalorder %s32, 3
      %p62 = por %p60, %p61
      %p63 = scmp.ne.s32.totalorder %s52, %s53
      %p64 = scmp.eq.s32.totalorder %s32, 0
      %p65 = por %p63, %p64
      %p66 = scmp.ne.s32.totalorder %s52, %s53
      %p67 = scmp.eq.s32.totalorder %s33, 3
      %p68 = por %p66, %p67
      %p70 = scmp.ne.s32.totalorder %s53, %s69
      %p71 = scmp.eq.s32.totalorder %s33, 0
      %p72 = por %p70, %p71
      %s74 = sadd.s32 %s73, 1
      %p77 = scmp.eq.s32.totalorder %s27, 3
      %p78 = scmp.ne.s32.totalorder %s73, %s75
      %p79 = scmp.eq.s32.totalorder %s27, 0
      %p80 = por %p78, %p79
      %p81 = scmp.ne.s32.totalorder %s73, %s75
      %p82 = scmp.eq.s32.totalorder %s32, 3
      %p83 = por %p81, %p82
      %p84 = scmp.ne.s32.totalorder %s75, %s76
      %p85 = scmp.eq.s32.totalorder %s32, 0
      %p86 = por %p84, %p85
      %p87 = scmp.ne.s32.totalorder %s75, %s76
      %p88 = scmp.eq.s32.totalorder %s33, 3
      %p89 = por %p87, %p88
      %p91 = scmp.ne.s32.totalorder %s76, %s90
      %p92 = scmp.eq.s32.totalorder %s33, 0
      %p93 = por %p91, %p92
      %s95 = sadd.s32 %s94, 1
      %p98 = scmp.eq.s32.totalorder %s27, 3
      %p99 = scmp.ne.s32.totalorder %s94, %s96
      %p100 = scmp.eq.s32.totalorder %s27, 0
      %p101 = por %p99, %p100
      %p102 = scmp.ne.s32.totalorder %s94, %s96
      %p103 = scmp.eq.s32.totalorder %s32, 3
      %p104 = por %p102, %p103
      %p105 = scmp.ne.s32.totalorder %s96, %s97
      %p106 = scmp.eq.s32.totalorder %s32, 0
      %p107 = por %p105, %p106
      %p108 = scmp.ne.s32.totalorder %s96, %s97
      %p109 = scmp.eq.s32.totalorder %s33, 3
      %p110 = por %p108, %p109
      %p112 = scmp.ne.s32.totalorder %s97, %s111
      %p113 = scmp.eq.s32.totalorder %s33, 0
      %p114 = por %p112, %p113
      %s116 = sadd.s32 %s115, 1
      %p119 = scmp.eq.s32.totalorder %s27, 3
      %p120 = scmp.ne.s32.totalorder %s115, %s117
      %p121 = scmp.eq.s32.totalorder %s27, 0
      %p122 = por %p120, %p121
      %p123 = scmp.ne.s32.totalorder %s115, %s117
      %p124 = scmp.eq.s32.totalorder %s32, 3
      %p125 = por %p123, %p124
      %p126 = scmp.ne.s32.totalorder %s117, %s118
      %p127 = scmp.eq.s32.totalorder %s32, 0
      %p128 = por %p126, %p127
      %p129 = scmp.ne.s32.totalorder %s117, %s118
      %p130 = scmp.eq.s32.totalorder %s33, 3
      %p131 = por %p129, %p130
      %p133 = scmp.ne.s32.totalorder %s118, %s132
      %p134 = scmp.eq.s32.totalorder %s33, 0
      %p135 = por %p133, %p134
      %s137 = sadd.s32 %s136, 1
      %p140 = scmp.eq.s32.totalorder %s27, 3
      %p141 = scmp.ne.s32.totalorder %s136, %s138
      %p142 = scmp.eq.s32.totalorder %s27, 0
      %p143 = por %p141, %p142
      %p144 = scmp.ne.s32.totalorder %s136, %s138
      %p145 = scmp.eq.s32.totalorder %s32, 3
      %p146 = por %p144, %p145
      %p147 = scmp.ne.s32.totalorder %s138, %s139
      %p148 = scmp.eq.s32.totalorder %s32, 0
      %p149 = por %p147, %p148
      %p150 = scmp.ne.s32.totalorder %s138, %s139
      %p151 = scmp.eq.s32.totalorder %s33, 3
      %p152 = por %p150, %p151
      %p154 = scmp.ne.s32.totalorder %s139, %s153
      %p155 = scmp.eq.s32.totalorder %s33, 0
      %p156 = por %p154, %p155
      %s158 = sadd.s32 %s157, 1
      %p161 = scmp.eq.s32.totalorder %s27, 3
      %p162 = scmp.ne.s32.totalorder %s157, %s159
      %p163 = scmp.eq.s32.totalorder %s27, 0
      %p164 = por %p162, %p163
      %p165 = scmp.ne.s32.totalorder %s157, %s159
      %p166 = scmp.eq.s32.totalorder %s32, 3
      %p167 = por %p165, %p166
      %p168 = scmp.ne.s32.totalorder %s159, %s160
      %p169 = scmp.eq.s32.totalorder %s32, 0
      %p170 = por %p168, %p169
      %p171 = scmp.ne.s32.totalorder %s159, %s160
      %p172 = scmp.eq.s32.totalorder %s33, 3
      %p173 = por %p171, %p172
      %p175 = scmp.ne.s32.totalorder %s160, %s174
      %p176 = scmp.eq.s32.totalorder %s33, 0
      %p177 = por %p175, %p176
      %s178 = ssub.s32 %s35, %s42
      %p179 = scmp.eq.s32.totalorder %s178, 0
      %s181 = sadd.s32 %s180, 1
      %s182 = scalar_select %p179, %s180, %s181
      %p185 = pneg %p179
      %p186 = scmp.eq.s32.totalorder %s27, 3
      %p187 = por %p185, %p186
      %p188 = scmp.ne.s32.totalorder %s180, %s183
      %p189 = scmp.eq.s32.totalorder %s27, 0
      %p190 = por %p188, %p189
      %p191 = scmp.ne.s32.totalorder %s180, %s183
      %p192 = scmp.eq.s32.totalorder %s32, 3
      %p193 = por %p191, %p192
      %p194 = scmp.ne.s32.totalorder %s183, %s184
      %p195 = scmp.eq.s32.totalorder %s32, 0
      %p196 = por %p194, %p195
      %p197 = scmp.ne.s32.totalorder %s183, %s184
      %p198 = scmp.eq.s32.totalorder %s33, 3
      %p199 = por %p197, %p198
      %p201 = scmp.ne.s32.totalorder %s184, %s200
      %p202 = scmp.eq.s32.totalorder %s33, 0
      %p203 = por %p201, %p202
      %s204 = ssub.s32 %s35, %s42
      %p205 = scmp.eq.s32.totalorder %s204, 0
      %s207 = sadd.s32 %s206, 1
      %s208 = scalar_select %p205, %s206, %s207
      %p211 = pneg %p205
      %p212 = scmp.eq.s32.totalorder %s27, 3
      %p213 = por %p211, %p212
      %p214 = scmp.ne.s32.totalorder %s206, %s209
      %p215 = scmp.eq.s32.totalorder %s27, 0
      %p216 = por %p214, %p215
      %p217 = scmp.ne.s32.totalorder %s206, %s209
      %p218 = scmp.eq.s32.totalorder %s32, 3
      %p219 = por %p217, %p218
      %p220 = scmp.ne.s32.totalorder %s209, %s210
      %p221 = scmp.eq.s32.totalorder %s32, 0
      %p222 = por %p220, %p221
      %p223 = scmp.ne.s32.totalorder %s209, %s210
      %p224 = scmp.eq.s32.totalorder %s33, 3
      %p225 = por %p223, %p224
      %p227 = scmp.ne.s32.totalorder %s210, %s226
      %p228 = scmp.eq.s32.totalorder %s33, 0
      %p229 = por %p227, %p228
      %s230 = ssub.s32 %s35, %s42
      %p231 = scmp.eq.s32.totalorder %s230, 0
      %s233 = sadd.s32 %s232, 1
      %s234 = scalar_select %p231, %s232, %s233
      %p237 = pneg %p231
      %p238 = scmp.eq.s32.totalorder %s27, 3
      %p239 = por %p237, %p238
      %p240 = scmp.ne.s32.totalorder %s232, %s235
      %p241 = scmp.eq.s32.totalorder %s27, 0
      %p242 = por %p240, %p241
      %p243 = scmp.ne.s32.totalorder %s232, %s235
      %p244 = scmp.eq.s32.totalorder %s32, 3
      %p245 = por %p243, %p244
      %p246 = scmp.ne.s32.totalorder %s235, %s236
      %p247 = scmp.eq.s32.totalorder %s32, 0
      %p248 = por %p246, %p247
      %p249 = scmp.ne.s32.totalorder %s235, %s236
      %p250 = scmp.eq.s32.totalorder %s33, 3
      %p251 = por %p249, %p250
      %p253 = scmp.ne.s32.totalorder %s236, %s252
      %p254 = scmp.eq.s32.totalorder %s33, 0
      %p255 = por %p253, %p254
      %s256 = ssub.s32 %s35, %s42
      %p257 = scmp.eq.s32.totalorder %s256, 0
      %s259 = sadd.s32 %s258, 1
      %s260 = scalar_select %p257, %s258, %s259
      %p263 = pneg %p257
      %p264 = scmp.eq.s32.totalorder %s27, 3
      %p265 = por %p263, %p264
      %p266 = scmp.ne.s32.totalorder %s258, %s261
      %p267 = scmp.eq.s32.totalorder %s27, 0
      %p268 = por %p266, %p267
      %p269 = scmp.ne.s32.totalorder %s258, %s261
      %p270 = scmp.eq.s32.totalorder %s32, 3
      %p271 = por %p269, %p270
      %p272 = scmp.ne.s32.totalorder %s261, %s262
      %p273 = scmp.eq.s32.totalorder %s32, 0
      %p274 = por %p272, %p273
      %p275 = scmp.ne.s32.totalorder %s261, %s262
      %p276 = scmp.eq.s32.totalorder %s33, 3
      %p277 = por %p275, %p276
      %p279 = scmp.ne.s32.totalorder %s262, %s278
      %p280 = scmp.eq.s32.totalorder %s33, 0
      %p281 = por %p279, %p280
      %s282 = ssub.s32 %s35, %s42
      %p283 = scmp.eq.s32.totalorder %s282, 0
      %s285 = sadd.s32 %s284, 1
      %s286 = scalar_select %p283, %s284, %s285
      %p289 = pneg %p283
      %p290 = scmp.eq.s32.totalorder %s27, 3
      %p291 = por %p289, %p290
      %p292 = scmp.ne.s32.totalorder %s284, %s287
      %p293 = scmp.eq.s32.totalorder %s27, 0
      %p294 = por %p292, %p293
      %p295 = scmp.ne.s32.totalorder %s284, %s287
      %p296 = scmp.eq.s32.totalorder %s32, 3
      %p297 = por %p295, %p296
      %p298 = scmp.ne.s32.totalorder %s287, %s288
      %p299 = scmp.eq.s32.totalorder %s32, 0
      %p300 = por %p298, %p299
      %p301 = scmp.ne.s32.totalorder %s287, %s288
      %p302 = scmp.eq.s32.totalorder %s33, 3
      %p303 = por %p301, %p302
      %p305 = scmp.ne.s32.totalorder %s288, %s304
      %p306 = scmp.eq.s32.totalorder %s33, 0
      %p307 = por %p305, %p306
      %s308 = ssub.s32 %s35, %s42
      %p309 = scmp.eq.s32.totalorder %s308, 0
      %s311 = sadd.s32 %s310, 1
      %s312 = scalar_select %p309, %s310, %s311
      %p315 = pneg %p309
      %p316 = scmp.eq.s32.totalorder %s27, 3
      %p317 = por %p315, %p316
      %p318 = scmp.ne.s32.totalorder %s310, %s313
      %p319 = scmp.eq.s32.totalorder %s27, 0
      %p320 = por %p318, %p319
      %p321 = scmp.ne.s32.totalorder %s310, %s313
      %p322 = scmp.eq.s32.totalorder %s32, 3
      %p323 = por %p321, %p322
      %p324 = scmp.ne.s32.totalorder %s313, %s314
      %p325 = scmp.eq.s32.totalorder %s32, 0
      %p326 = por %p324, %p325
      %p327 = scmp.ne.s32.totalorder %s313, %s314
      %p328 = scmp.eq.s32.totalorder %s33, 3
      %p329 = por %p327, %p328
      %p331 = scmp.ne.s32.totalorder %s314, %s330
      %p332 = scmp.eq.s32.totalorder %s33, 0
      %p333 = por %p331, %p332
      %s334 = ssub.s32 %s35, %s42
      %p335 = scmp.eq.s32.totalorder %s334, 0
      %s337 = sadd.s32 %s336, 1
      %s338 = scalar_select %p335, %s336, %s337
      %p341 = pneg %p335
      %p342 = scmp.eq.s32.totalorder %s27, 3
      %p343 = por %p341, %p342
      %p344 = scmp.ne.s32.totalorder %s336, %s339
      %p345 = scmp.eq.s32.totalorder %s27, 0
      %p346 = por %p344, %p345
      %p347 = scmp.ne.s32.totalorder %s336, %s339
      %p348 = scmp.eq.s32.totalorder %s32, 3
      %p349 = por %p347, %p348
      %p350 = scmp.ne.s32.totalorder %s339, %s340
      %p351 = scmp.eq.s32.totalorder %s32, 0
      %p352 = por %p350, %p351
      %p353 = scmp.ne.s32.totalorder %s339, %s340
      %p354 = scmp.eq.s32.totalorder %s33, 3
      %p355 = por %p353, %p354
      %p357 = scmp.ne.s32.totalorder %s340, %s356
      %p358 = scmp.eq.s32.totalorder %s33, 0
      %p359 = por %p357, %p358
      %s360 = ssub.s32 %s35, %s42
      %p361 = scmp.eq.s32.totalorder %s360, 0
      %s363 = sadd.s32 %s362, 1
      %s364 = scalar_select %p361, %s362, %s363
      %p367 = pneg %p361
      %p368 = scmp.eq.s32.totalorder %s27, 3
      %p369 = por %p367, %p368
      %p370 = scmp.ne.s32.totalorder %s362, %s365
      %p371 = scmp.eq.s32.totalorder %s27, 0
      %p372 = por %p370, %p371
      %p373 = scmp.ne.s32.totalorder %s362, %s365
      %p374 = scmp.eq.s32.totalorder %s32, 3
      %p375 = por %p373, %p374
      %p376 = scmp.ne.s32.totalorder %s365, %s366
      %p377 = scmp.eq.s32.totalorder %s32, 0
      %p378 = por %p376, %p377
      %p379 = scmp.ne.s32.totalorder %s365, %s366
      %p380 = scmp.eq.s32.totalorder %s33, 3
      %p381 = por %p379, %p380
      %p383 = scmp.ne.s32.totalorder %s366, %s382
      %p384 = scmp.eq.s32.totalorder %s33, 0
      %p385 = por %p383, %p384
      %s386 = ssub.s32 %s35, %s42
      %p387 = scmp.eq.s32.totalorder %s386, 0
      %s389 = sadd.s32 %s388, 1
      %s390 = scalar_select %p387, %s388, %s389
      %p393 = pneg %p387
      %p394 = scmp.eq.s32.totalorder %s27, 3
      %p395 = por %p393, %p394
      %p396 = scmp.ne.s32.totalorder %s388, %s391
      %p397 = scmp.eq.s32.totalorder %s27, 0
      %p398 = por %p396, %p397
      %p399 = scmp.ne.s32.totalorder %s388, %s391
      %p400 = scmp.eq.s32.totalorder %s32, 3
      %p401 = por %p399, %p400
      %p402 = scmp.ne.s32.totalorder %s391, %s392
      %p403 = scmp.eq.s32.totalorder %s32, 0
      %p404 = por %p402, %p403
      %p405 = scmp.ne.s32.totalorder %s391, %s392
      %p406 = scmp.eq.s32.totalorder %s33, 3
      %p407 = por %p405, %p406
      %p409 = scmp.ne.s32.totalorder %s392, %s408
      %p410 = scmp.eq.s32.totalorder %s33, 0
      %p411 = por %p409, %p410
      %s412 = ssub.s32 %s35, %s42
      %p413 = scmp.eq.s32.totalorder %s412, 0
      %s415 = sadd.s32 %s414, 1
      %s416 = scalar_select %p413, %s414, %s415
      %p419 = pneg %p413
      %p420 = scmp.eq.s32.totalorder %s27, 3
      %p421 = por %p419, %p420
      %p422 = scmp.ne.s32.totalorder %s414, %s417
      %p423 = scmp.eq.s32.totalorder %s27, 0
      %p424 = por %p422, %p423
      %p425 = scmp.ne.s32.totalorder %s414, %s417
      %p426 = scmp.eq.s32.totalorder %s32, 3
      %p427 = por %p425, %p426
      %p428 = scmp.ne.s32.totalorder %s417, %s418
      %p429 = scmp.eq.s32.totalorder %s32, 0
      %p430 = por %p428, %p429
      %p431 = scmp.ne.s32.totalorder %s417, %s418
      %p432 = scmp.eq.s32.totalorder %s33, 3
      %p433 = por %p431, %p432
      %p435 = scmp.ne.s32.totalorder %s418, %s434
      %p436 = scmp.eq.s32.totalorder %s33, 0
      %p437 = por %p435, %p436
      %s438 = ssub.s32 %s35, %s42
      %p439 = scmp.eq.s32.totalorder %s438, 0
      %s441 = sadd.s32 %s440, 1
      %s442 = scalar_select %p439, %s440, %s441
      %p445 = pneg %p439
      %p446 = scmp.eq.s32.totalorder %s27, 3
      %p447 = por %p445, %p446
      %p448 = scmp.ne.s32.totalorder %s440, %s443
      %p449 = scmp.eq.s32.totalorder %s27, 0
      %p450 = por %p448, %p449
      %p451 = scmp.ne.s32.totalorder %s440, %s443
      %p452 = scmp.eq.s32.totalorder %s32, 3
      %p453 = por %p451, %p452
      %p454 = scmp.ne.s32.totalorder %s443, %s444
      %p455 = scmp.eq.s32.totalorder %s32, 0
      %p456 = por %p454, %p455
      %p457 = scmp.ne.s32.totalorder %s443, %s444
      %p458 = scmp.eq.s32.totalorder %s33, 3
      %p459 = por %p457, %p458
      %p461 = scmp.ne.s32.totalorder %s444, %s460
      %p462 = scmp.eq.s32.totalorder %s33, 0
      %p463 = por %p461, %p462
      %s464 = ssub.s32 %s35, %s42
      %p465 = scmp.eq.s32.totalorder %s464, 0
      %s467 = sadd.s32 %s466, 1
      %s468 = scalar_select %p465, %s466, %s467
      %p471 = pneg %p465
      %p472 = scmp.eq.s32.totalorder %s27, 3
      %p473 = por %p471, %p472
      %p474 = scmp.ne.s32.totalorder %s466, %s469
      %p475 = scmp.eq.s32.totalorder %s27, 0
      %p476 = por %p474, %p475
      %p477 = scmp.ne.s32.totalorder %s466, %s469
      %p478 = scmp.eq.s32.totalorder %s32, 3
      %p479 = por %p477, %p478
      %p480 = scmp.ne.s32.totalorder %s469, %s470
      %p481 = scmp.eq.s32.totalorder %s32, 0
      %p482 = por %p480, %p481
      %p483 = scmp.ne.s32.totalorder %s469, %s470
      %p484 = scmp.eq.s32.totalorder %s33, 3
      %p485 = por %p483, %p484
      %p487 = scmp.ne.s32.totalorder %s470, %s486
      %p488 = scmp.eq.s32.totalorder %s33, 0
      %p489 = por %p487, %p488
      %s490 = ssub.s32 %s34, %s46
      %p491 = scmp.eq.s32.totalorder %s490, 0
      %s493 = sadd.s32 %s492, 1
      %s494 = scalar_select %p491, %s492, %s493
      %p497 = pneg %p491
      %p498 = scmp.eq.s32.totalorder %s27, 3
      %p499 = por %p497, %p498
      %p500 = scmp.ne.s32.totalorder %s492, %s495
      %p501 = scmp.eq.s32.totalorder %s27, 0
      %p502 = por %p500, %p501
      %p503 = scmp.ne.s32.totalorder %s492, %s495
      %p504 = scmp.eq.s32.totalorder %s32, 3
      %p505 = por %p503, %p504
      %p506 = scmp.ne.s32.totalorder %s495, %s496
      %p507 = scmp.eq.s32.totalorder %s32, 0
      %p508 = por %p506, %p507
      %p509 = scmp.ne.s32.totalorder %s495, %s496
      %p510 = scmp.eq.s32.totalorder %s33, 3
      %p511 = por %p509, %p510
      %p513 = scmp.ne.s32.totalorder %s496, %s512
      %p514 = scmp.eq.s32.totalorder %s33, 0
      %p515 = por %p513, %p514
      %p516 = scmp.le.s32.totalorder 1, %s27
      %p517 = scmp.lt.s32.totalorder %s27, 5
      %p518 = pnand %p516, %p517
      %p519 = pneg %p518
      // Predicated region
      $region9: #{_lambda_.1} parent=5 // pred_check
        _
      $region10: #{_lambda_.1} parent=5 // pred_check_branch
        %521 = sbr.rel (%p518) target = $region12
      $region11: #{_lambda_.1} parent=5 // pred_region
        %s522 = ssub.s32 %s27, 1
        // Predicated region
        $region13: #{_lambda_.1} parent=11 // pred_check
          %p523 = pneg %p86
        $region14: #{_lambda_.1} parent=11 // pred_check_branch
          %525 = sbr.rel (%p523) target = $region16
        $region15: #{_lambda_.1} parent=11 // pred_region
          _
        $region16: #{_lambda_.1} parent=11 // pred_fallthru
          _
        // Predicated region
        $region17: #{_lambda_.1} parent=11 // pred_check
          %p526 = pneg %p107
        $region18: #{_lambda_.1} parent=11 // pred_check_branch
          %528 = sbr.rel (%p526) target = $region20
        $region19: #{_lambda_.1} parent=11 // pred_region
          _
        $region20: #{_lambda_.1} parent=11 // pred_fallthru
          _
        // Predicated region
        $region21: #{_lambda_.1} parent=11 // pred_check
          %p529 = pneg %p128
        $region22: #{_lambda_.1} parent=11 // pred_check_branch
          %531 = sbr.rel (%p529) target = $region24
        $region23: #{_lambda_.1} parent=11 // pred_region
          _
        $region24: #{_lambda_.1} parent=11 // pred_fallthru
          _
        // Predicated region
        $region25: #{_lambda_.1} parent=11 // pred_check
          %p532 = pneg %p149
        $region26: #{_lambda_.1} parent=11 // pred_check_branch
          %534 = sbr.rel (%p532) target = $region28
        $region27: #{_lambda_.1} parent=11 // pred_region
          _
        $region28: #{_lambda_.1} parent=11 // pred_fallthru
          _
        // Predicated region
        $region29: #{_lambda_.1} parent=11 // pred_check
          %p535 = pneg %p170
        $region30: #{_lambda_.1} parent=11 // pred_check_branch
          %537 = sbr.rel (%p535) target = $region32
        $region31: #{_lambda_.1} parent=11 // pred_region
          _
        $region32: #{_lambda_.1} parent=11 // pred_fallthru
          _
      $region12: #{_lambda_.1} parent=5 // pred_fallthru
        _
      %p538 = scmp.lt.s32.totalorder %s27, 4
      // Predicated region
      $region33: #{_lambda_.1} parent=5 // pred_check
        %p539 = pneg %p538
      $region34: #{_lambda_.1} parent=5 // pred_check_branch
        %541 = sbr.rel (%p539) target = $region36
      $region35: #{_lambda_.1} parent=5 // pred_region
        // Predicated region
        $region37: #{_lambda_.1} parent=35 // pred_check
          %p542 = pneg %p59
        $region38: #{_lambda_.1} parent=35 // pred_check_branch
          %544 = sbr.rel (%p542) target = $region40
        $region39: #{_lambda_.1} parent=35 // pred_region
          %p545 = scmp.lt.s32.totalorder %s34, 1
          %s546 = scalar_select %p545, %s34, 1
          %s547 = smul.addr %s546, 2
          %s548 = smul.addr %s547, 2
          %s549 = scalar_lea.vmem %s0, %s548
        $region40: #{_lambda_.1} parent=35 // pred_fallthru
          _
        // Predicated region
        $region41: #{_lambda_.1} parent=35 // pred_check
          %p550 = pneg %p190
        $region42: #{_lambda_.1} parent=35 // pred_check_branch
          %552 = sbr.rel (%p550) target = $region44
        $region43: #{_lambda_.1} parent=35 // pred_region
          %p553 = scmp.lt.s32.totalorder %s35, 1
          %s554 = scalar_select %p553, %s35, 1
          %s555 = scalar_lea.vmem %s6, %s554
        $region44: #{_lambda_.1} parent=35 // pred_fallthru
          _
        // Predicated region
        $region45: #{_lambda_.1} parent=35 // pred_check
          %p556 = pneg %p216
        $region46: #{_lambda_.1} parent=35 // pred_check_branch
          %558 = sbr.rel (%p556) target = $region48
        $region47: #{_lambda_.1} parent=35 // pred_region
          %p559 = scmp.lt.s32.totalorder %s35, 1
          %s560 = scalar_select %p559, %s35, 1
          %s561 = scalar_lea.vmem %s7, %s560
        $region48: #{_lambda_.1} parent=35 // pred_fallthru
          _
        // Predicated region
        $region49: #{_lambda_.1} parent=35 // pred_check
          %p562 = pneg %p242
        $region50: #{_lambda_.1} parent=35 // pred_check_branch
          %564 = sbr.rel (%p562) target = $region52
        $region51: #{_lambda_.1} parent=35 // pred_region
          %p565 = scmp.lt.s32.totalorder %s35, 1
          %s566 = scalar_select %p565, %s35, 1
          %s567 = smul.addr %s566, 4
          %s568 = smul.addr %s567, 4
          %s569 = scalar_lea.vmem %s8, %s568
        $region52: #{_lambda_.1} parent=35 // pred_fallthru
          _
        // Predicated region
        $region53: #{_lambda_.1} parent=35 // pred_check
          %p570 = pneg %p268
        $region54: #{_lambda_.1} parent=35 // pred_check_branch
          %572 = sbr.rel (%p570) target = $region56
        $region55: #{_lambda_.1} parent=35 // pred_region
          %p573 = scmp.lt.s32.totalorder %s35, 1
          %s574 = scalar_select %p573, %s35, 1
          %s575 = scalar_lea.vmem %s9, %s574
        $region56: #{_lambda_.1} parent=35 // pred_fallthru
          _
        // Predicated region
        $region57: #{_lambda_.1} parent=35 // pred_check
          %p576 = pneg %p294
        $region58: #{_lambda_.1} parent=35 // pred_check_branch
          %578 = sbr.rel (%p576) target = $region60
        $region59: #{_lambda_.1} parent=35 // pred_region
          %p579 = scmp.lt.s32.totalorder %s35, 1
          %s580 = scalar_select %p579, %s35, 1
          %s581 = smul.addr %s580, 4
          %s582 = smul.addr %s581, 4
          %s583 = scalar_lea.vmem %s10, %s582
        $region60: #{_lambda_.1} parent=35 // pred_fallthru
          _
        // Predicated region
        $region61: #{_lambda_.1} parent=35 // pred_check
          %p584 = pneg %p320
        $region62: #{_lambda_.1} parent=35 // pred_check_branch
          %586 = sbr.rel (%p584) target = $region64
        $region63: #{_lambda_.1} parent=35 // pred_region
          %p587 = scmp.lt.s32.totalorder %s35, 1
          %s588 = scalar_select %p587, %s35, 1
          %s589 = scalar_lea.vmem %s11, %s588
        $region64: #{_lambda_.1} parent=35 // pred_fallthru
          _
        // Predicated region
        $region65: #{_lambda_.1} parent=35 // pred_check
          %p590 = pneg %p346
        $region66: #{_lambda_.1} parent=35 // pred_check_branch
          %592 = sbr.rel (%p590) target = $region68
        $region67: #{_lambda_.1} parent=35 // pred_region
          %p593 = scmp.lt.s32.totalorder %s35, 1
          %s594 = scalar_select %p593, %s35, 1
          %s595 = scalar_lea.vmem %s12, %s594
        $region68: #{_lambda_.1} parent=35 // pred_fallthru
          _
        // Predicated region
        $region69: #{_lambda_.1} parent=35 // pred_check
          %p596 = pneg %p372
        $region70: #{_lambda_.1} parent=35 // pred_check_branch
          %598 = sbr.rel (%p596) target = $region72
        $region71: #{_lambda_.1} parent=35 // pred_region
          %p599 = scmp.lt.s32.totalorder %s35, 1
          %s600 = scalar_select %p599, %s35, 1
          %s601 = scalar_lea.vmem %s13, %s600
        $region72: #{_lambda_.1} parent=35 // pred_fallthru
          _
        // Predicated region
        $region73: #{_lambda_.1} parent=35 // pred_check
          %p602 = pneg %p398
        $region74: #{_lambda_.1} parent=35 // pred_check_branch
          %604 = sbr.rel (%p602) target = $region76
        $region75: #{_lambda_.1} parent=35 // pred_region
          %p605 = scmp.lt.s32.totalorder %s35, 1
          %s606 = scalar_select %p605, %s35, 1
          %s607 = smul.addr %s606, 4
          %s608 = smul.addr %s607, 4
          %s609 = scalar_lea.vmem %s14, %s608
        $region76: #{_lambda_.1} parent=35 // pred_fallthru
          _
        // Predicated region
        $region77: #{_lambda_.1} parent=35 // pred_check
          %p610 = pneg %p424
        $region78: #{_lambda_.1} parent=35 // pred_check_branch
          %612 = sbr.rel (%p610) target = $region80
        $region79: #{_lambda_.1} parent=35 // pred_region
          %p613 = scmp.lt.s32.totalorder %s35, 1
          %s614 = scalar_select %p613, %s35, 1
          %s615 = scalar_lea.vmem %s15, %s614
        $region80: #{_lambda_.1} parent=35 // pred_fallthru
          _
        // Predicated region
        $region81: #{_lambda_.1} parent=35 // pred_check
          %p616 = pneg %p450
        $region82: #{_lambda_.1} parent=35 // pred_check_branch
          %618 = sbr.rel (%p616) target = $region84
        $region83: #{_lambda_.1} parent=35 // pred_region
          %p619 = scmp.lt.s32.totalorder %s35, 1
          %s620 = scalar_select %p619, %s35, 1
          %s621 = smul.addr %s620, 8
          %s622 = smul.addr %s621, 4
          %s623 = scalar_lea.vmem %s16, %s622
        $region84: #{_lambda_.1} parent=35 // pred_fallthru
          _
        // Predicated region
        $region85: #{_lambda_.1} parent=35 // pred_check
          %p624 = pneg %p476
        $region86: #{_lambda_.1} parent=35 // pred_check_branch
          %626 = sbr.rel (%p624) target = $region88
        $region87: #{_lambda_.1} parent=35 // pred_region
          %p627 = scmp.lt.s32.totalorder %s35, 1
          %s628 = scalar_select %p627, %s35, 1
          %s629 = scalar_lea.vmem %s17, %s628
        $region88: #{_lambda_.1} parent=35 // pred_fallthru
          _
      $region36: #{_lambda_.1} parent=5 // pred_fallthru
        _
      %p630 = scmp.le.s32.totalorder 1, %s27
      %p631 = scmp.lt.s32.totalorder %s27, 5
      %p632 = pnand %p630, %p631
      %p633 = pneg %p632
      // Predicated region
      $region89: #{_lambda_.1} parent=5 // pred_check
        _
      $region90: #{_lambda_.1} parent=5 // pred_check_branch
        %635 = sbr.rel (%p632) target = $region92
      $region91: #{_lambda_.1} parent=5 // pred_region
        %s636 = ssub.s32 %s27, 1
        %p637 = scmp.lt.s32.totalorder %s36, 1
        %s638 = scalar_select %p637, %s36, 1
        %s639 = smul.addr %s638, 2
        %s640 = smul.addr %s639, 2
        %s641 = scalar_lea.vmem %s0, %s640
        %p642 = pneg %p65
        %p643 = pneg %p62
        %p644 = pneg %p86
        %p645 = pneg %p83
        %p646 = pneg %p107
        %p647 = pneg %p104
        %p648 = pneg %p128
        %p649 = pneg %p125
        %p650 = pneg %p149
        %p651 = pneg %p146
        %p652 = pneg %p170
        %p653 = pneg %p167
        %p654 = scmp.lt.s32.totalorder %s37, 1
        %s655 = scalar_select %p654, %s37, 1
        %s656 = scalar_lea.vmem %s6, %s655
        %p657 = pneg %p196
        %p658 = pneg %p193
        %p659 = scmp.lt.s32.totalorder %s37, 1
        %s660 = scalar_select %p659, %s37, 1
        %s661 = scalar_lea.vmem %s7, %s660
        %p662 = pneg %p222
        %p663 = pneg %p219
        %p664 = scmp.lt.s32.totalorder %s37, 1
        %s665 = scalar_select %p664, %s37, 1
        %s666 = smul.addr %s665, 4
        %s667 = smul.addr %s666, 4
        %s668 = scalar_lea.vmem %s8, %s667
        %p669 = pneg %p248
        %p670 = pneg %p245
        %p671 = scmp.lt.s32.totalorder %s37, 1
        %s672 = scalar_select %p671, %s37, 1
        %s673 = scalar_lea.vmem %s9, %s672
        %p674 = pneg %p274
        %p675 = pneg %p271
        %p676 = scmp.lt.s32.totalorder %s37, 1
        %s677 = scalar_select %p676, %s37, 1
        %s678 = smul.addr %s677, 4
        %s679 = smul.addr %s678, 4
        %s680 = scalar_lea.vmem %s10, %s679
        %p681 = pneg %p300
        %p682 = pneg %p297
        %p683 = scmp.lt.s32.totalorder %s37, 1
        %s684 = scalar_select %p683, %s37, 1
        %s685 = scalar_lea.vmem %s11, %s684
        %p686 = pneg %p326
        %p687 = pneg %p323
        %p688 = scmp.lt.s32.totalorder %s37, 1
        %s689 = scalar_select %p688, %s37, 1
        %s690 = scalar_lea.vmem %s12, %s689
        %p691 = pneg %p352
        %p692 = pneg %p349
        %p693 = scmp.lt.s32.totalorder %s37, 1
        %s694 = scalar_select %p693, %s37, 1
        %s695 = scalar_lea.vmem %s13, %s694
        %p696 = pneg %p378
        %p697 = pneg %p375
        %p698 = scmp.lt.s32.totalorder %s37, 1
        %s699 = scalar_select %p698, %s37, 1
        %s700 = smul.addr %s699, 4
        %s701 = smul.addr %s700, 4
        %s702 = scalar_lea.vmem %s14, %s701
        %p703 = pneg %p404
        %p704 = pneg %p401
        %p705 = scmp.lt.s32.totalorder %s37, 1
        %s706 = scalar_select %p705, %s37, 1
        %s707 = scalar_lea.vmem %s15, %s706
        %p708 = pneg %p430
        %p709 = pneg %p427
        %p710 = scmp.lt.s32.totalorder %s37, 1
        %s711 = scalar_select %p710, %s37, 1
        %s712 = smul.addr %s711, 8
        %s713 = smul.addr %s712, 4
        %s714 = scalar_lea.vmem %s16, %s713
        %p715 = pneg %p456
        %p716 = pneg %p453
        %p717 = scmp.lt.s32.totalorder %s37, 1
        %s718 = scalar_select %p717, %s37, 1
        %s719 = scalar_lea.vmem %s17, %s718
        %p720 = pneg %p482
        %p721 = pneg %p479
        %p722 = pneg %p508
        %p723 = pneg %p505
        %s724 = sand.u32 %s495, 1
        %s725 = scalar_lea.sflag [#allocation4], %s724
        %s726 = sand.u32 %s495, 1
        %s727 = smul.addr %s726, 4
        %s728 = scalar_lea.vmem [#allocation3], %s727
        %p729 = scmp.lt.s32.totalorder %s36, 1
        %s730 = scalar_select %p729, %s36, 1
        %s731 = smul.addr %s730, 2
        %s732 = smul.addr %s731, 2
        %s733 = scalar_lea.vmem %s0, %s732
        %p734 = scmp.lt.s32.totalorder %s37, 1
        %s735 = scalar_select %p734, %s37, 1
        %s736 = scalar_lea.vmem %s6, %s735
        %p737 = scmp.lt.s32.totalorder %s37, 1
        %s738 = scalar_select %p737, %s37, 1
        %s739 = scalar_lea.vmem %s7, %s738
        %p740 = scmp.lt.s32.totalorder %s37, 1
        %s741 = scalar_select %p740, %s37, 1
        %s742 = smul.addr %s741, 4
        %s743 = smul.addr %s742, 4
        %s744 = scalar_lea.vmem %s8, %s743
        %p745 = scmp.lt.s32.totalorder %s37, 1
        %s746 = scalar_select %p745, %s37, 1
        %s747 = scalar_lea.vmem %s9, %s746
        %p748 = scmp.lt.s32.totalorder %s37, 1
        %s749 = scalar_select %p748, %s37, 1
        %s750 = smul.addr %s749, 4
        %s751 = smul.addr %s750, 4
        %s752 = scalar_lea.vmem %s10, %s751
        %p753 = scmp.lt.s32.totalorder %s37, 1
        %s754 = scalar_select %p753, %s37, 1
        %s755 = scalar_lea.vmem %s11, %s754
        %p756 = scmp.lt.s32.totalorder %s37, 1
        %s757 = scalar_select %p756, %s37, 1
        %s758 = scalar_lea.vmem %s12, %s757
        %p759 = scmp.lt.s32.totalorder %s37, 1
        %s760 = scalar_select %p759, %s37, 1
        %s761 = scalar_lea.vmem %s13, %s760
        %p762 = scmp.lt.s32.totalorder %s37, 1
        %s763 = scalar_select %p762, %s37, 1
        %s764 = smul.addr %s763, 4
        %s765 = smul.addr %s764, 4
        %s766 = scalar_lea.vmem %s14, %s765
        %p767 = scmp.lt.s32.totalorder %s37, 1
        %s768 = scalar_select %p767, %s37, 1
        %s769 = scalar_lea.vmem %s15, %s768
        %p770 = scmp.lt.s32.totalorder %s37, 1
        %s771 = scalar_select %p770, %s37, 1
        %s772 = smul.addr %s771, 8
        %s773 = smul.addr %s772, 4
        %s774 = scalar_lea.vmem %s16, %s773
        %p775 = scmp.lt.s32.totalorder %s37, 1
        %s776 = scalar_select %p775, %s37, 1
        %s777 = scalar_lea.vmem %s17, %s776
        %p779 = scmp.eq.s32.totalorder %s37, 0
        // Predicated region
        $region93: #{_lambda_.1} parent=91 // pred_check
          %p780 = pneg %p779
        $region94: #{_lambda_.1} parent=91 // pred_check_branch
          %782 = sbr.rel (%p780) target = $region96
        $region95: #{_lambda_.1} parent=91 // pred_region
          %v783 = vld [vmem:[%s733] sm:$0xf]
          %v784 = vld [vmem:[%s1] sm:$0xf]
          %v785 = vld [vmem:[%s1 + $0x4] sm:$0xf]
          %v786 = vld [vmem:[%s1 + $0x8] sm:$0xf]
          %v787 = vld [vmem:[%s1 + $0xc] sm:$0xf]
          %v788 = vld [vmem:[%s1 + $0x10] sm:$0xf]
          %v789 = vld [vmem:[%s1 + $0x14] sm:$0xf]
          %v790 = vld [vmem:[%s1 + $0x18] sm:$0xf]
          %v791 = vld [vmem:[%s1 + $0x1c] sm:$0xf]
          %v792 = vld [vmem:[%s1 + $0x20] sm:$0xf]
          %v793 = vld [vmem:[%s1 + $0x24] sm:$0xf]
          %v794 = vld [vmem:[%s1 + $0x28] sm:$0xf]
          %v795 = vld [vmem:[%s1 + $0x2c] sm:$0xf]
          %v796 = vld [vmem:[%s1 + $0x30] sm:$0xf]
          %v797 = vld [vmem:[%s1 + $0x34] sm:$0xf]
          %v798 = vld [vmem:[%s1 + $0x38] sm:$0xf]
          %v799 = vld [vmem:[%s1 + $0x3c] sm:$0xf]
          %v800 = vld [vmem:[%s1 + $0x40] sm:$0xf]
          %v801 = vld [vmem:[%s1 + $0x44] sm:$0xf]
          %v802 = vld [vmem:[%s1 + $0x48] sm:$0xf]
          %v803 = vld [vmem:[%s1 + $0x4c] sm:$0xf]
          %v804 = vld [vmem:[%s1 + $0x50] sm:$0xf]
          %v805 = vld [vmem:[%s1 + $0x54] sm:$0xf]
          %v806 = vld [vmem:[%s1 + $0x58] sm:$0xf]
          %v807 = vld [vmem:[%s1 + $0x5c] sm:$0xf]
          %v808 = vld [vmem:[%s3] sm:$0x3]
          %v809 = vunpack.c.l.bf16 %v808
          %811 = vst [vmem:[#allocation1] ss:$4 sm:$0xff] %v783
          %v812 = vld.sshfl [vmem:[#allocation1] sm:$0xff pattern:$0x73625140]
          %v813 = vld.sshfl [vmem:[#allocation1 + $0x8] sm:$0xff pattern:$0x73625140]
          %v839 = vunpack.c.l.b16 %v784
          %v840 = vunpack.c.l.b16 %v785
          %v841 = vunpack.c.l.b16 %v786
          %v842 = vunpack.c.l.b16 %v787
          %v843 = vunpack.c.l.b16 %v788
          %v844 = vunpack.c.l.b16 %v789
          %v845 = vunpack.c.l.b16 %v790
          %v846 = vunpack.c.l.b16 %v791
          %v847 = vunpack.c.l.b16 %v792
          %v848 = vunpack.c.l.b16 %v793
          %v849 = vunpack.c.l.b16 %v794
          %v850 = vunpack.c.l.b16 %v795
          %v851 = vunpack.c.l.b16 %v796
          %v852 = vunpack.c.l.b16 %v797
          %v853 = vunpack.c.l.b16 %v798
          %v854 = vunpack.c.l.b16 %v799
          %v855 = vunpack.c.l.b16 %v800
          %v856 = vunpack.c.l.b16 %v801
          %v857 = vunpack.c.l.b16 %v802
          %v858 = vunpack.c.l.b16 %v803
          %v859 = vunpack.c.l.b16 %v804
          %v860 = vunpack.c.l.b16 %v805
          %v861 = vunpack.c.l.b16 %v806
          %v862 = vunpack.c.l.b16 %v807
          %v863 = vpack.c.b16 %v840, %v839
          %v864 = vpack.c.b16 %v842, %v841
          %v865 = vpack.c.b16 %v844, %v843
          %v866 = vpack.c.b16 %v846, %v845
          %v867 = vpack.c.b16 %v848, %v847
          %v868 = vpack.c.b16 %v850, %v849
          %v869 = vpack.c.b16 %v852, %v851
          %v870 = vpack.c.b16 %v854, %v853
          %v871 = vpack.c.b16 %v856, %v855
          %v872 = vpack.c.b16 %v858, %v857
          %v873 = vpack.c.b16 %v860, %v859
          %v874 = vpack.c.b16 %v862, %v861
          %vm887 = vcmask 523264
          %v888 = vsel %vm887, %v813, 0
          %890 = vmatpush.bf16.msra.mxu0 %v870
          %891 = vmatpush.bf16.msra.mxu0 %v869
          %892 = vmatpush.bf16.msra.mxu0 %v868
          %893 = vmatpush.bf16.msra.mxu0 %v867
          %894 = vmatpush.bf16.msra.mxu0 %v866
          %895 = vmatpush.bf16.msra.mxu0 %v865
          %896 = vmatpush.bf16.msra.mxu0 %v864
          %897 = vmatpush.bf16.msra.mxu0 %v863
          %898 = vmatmul.bf16.gmra.mxu0 %v812
          %v899 = vpop.f32.mrf.mxu0
          %v900 = vadd.f32 %v809, %v899
          %v901 = vpop.f32.mrf.mxu0
          %902 = vdwg.mxu0
          %903 = vmatpush.bf16.msra.mxu0 0
          %904 = vmatpush.bf16.msra.mxu0 0
          %905 = vmatpush.bf16.msra.mxu0 0
          %906 = vmatpush.bf16.msra.mxu0 0
          %907 = vmatpush.bf16.msra.mxu0 %v874
          %908 = vmatpush.bf16.msra.mxu0 %v873
          %909 = vmatpush.bf16.msra.mxu0 %v872
          %910 = vmatpush.bf16.msra.mxu0 %v871
          %911 = vmatmul.bf16.gmra.mxu0 %v888
          %v912 = vpop.f32.mrf.mxu0
          %v913 = vadd.f32 %v900, %v912
          %v914 = vpop.f32.mrf.mxu0
          %915 = vdwg.mxu0
          %v916 = vld [vmem:[%s2] sm:$0x1]
          %v917 = vunpack.c.l.bf16 %v916
          %v919 = vrot.slane %v913, 7
          %vm921 = vcmask 1040384
          %v922 = vsel %vm921, %v917, %v919
          %vm923 = vcmask 1044480
          %v924 = vsel %vm923, %v922, 0.0
          %v925 = vld [vmem:[%s4] sm:$0x1]
          %v926 = vld [vmem:[%s5] sm:$0x1]
          %vm927 = vcmask 261120
          %v928 = vsel %vm927, %v924, 0.0
          %929 = vadd.xlane.f32.xlu0 %v928
          %v930 = vpop.xlane.xlu0 %929
          %v931 = vrcp.pop 32.0
          %v932 = vmul.f32 32.0, %v931
          %v933 = vsub.f32 1.0, %v932
          %v934 = vmul.f32 %v931, %v933
          %v935 = vadd.f32 %v931, %v934
          %vm936 = vweird.f32 %v931
          %v937 = vsel %vm936, %v931, %v935
          %v938 = vmul.f32 %v930, %v937
          %v939 = vsub.f32 %v924, %v938
          %v940 = vmul.f32 %v939, %v939
          %v941 = vsel %vm927, %v940, 0.0
          %942 = vadd.xlane.f32.xlu0 %v941
          %v943 = vpop.xlane.xlu0 %942
          %v944 = vmul.f32 %v943, %v937
          %v945 = vadd.f32 %v944, 1e-05
          %v946 = vrsqrt.pop %v945
          %v947 = vmul.f32 %v946, %v945
          %v948 = vmul.f32 %v947, %v946
          %v949 = vmul.f32 0.5, %v948
          %v950 = vsub.f32 1.5, %v949
          %v951 = vmul.f32 %v946, %v950
          %vm952 = vweird.f32 %v945
          %vm953 = vweird.f32 %v946
          %vm954 = vmor %vm952, %vm953
          %v955 = vsel %vm954, %v946, %v951
          %v956 = vmul.f32 %v939, %v955
          %v958 = vperm.slane %v925, 0
          %v960 = vmul.f32 %v956, %v958
          %v962 = vperm.slane %v926, 0
          %v964 = vadd.f32 %v960, %v962
          %965 = vst.msk [vmem:[#allocation2] sm:$0xff] %vm927, %v964
        $region96: #{_lambda_.1} parent=91 // pred_fallthru
          _
        %v966 = vld [vmem:[#allocation2] sm:$0xff]
        %v967 = vlaneseq
        %v968 = vand.u32 %v967, 127
        %vm969 = vcmp.lt.s32.totalorder %v968, 5
        %v970 = vsel %vm969, 0.0, -1e+30
        %v971 = vld [vmem:[%s736] sm:$0x1]
        %v972 = vld [vmem:[%s739] sm:$0x1]
        %vm973 = vcmask 261120
        %v974 = vsel %vm973, %v966, 0.0
        %975 = vadd.xlane.f32.xlu0 %v974
        %v976 = vpop.xlane.xlu0 %975
        %v977 = vrcp.pop 32.0
        %v978 = vmul.f32 32.0, %v977
        %v979 = vsub.f32 1.0, %v978
        %v980 = vmul.f32 %v977, %v979
        %v981 = vadd.f32 %v977, %v980
        %vm982 = vweird.f32 %v977
        %v983 = vsel %vm982, %v977, %v981
        %v984 = vmul.f32 %v976, %v983
        %v985 = vsub.f32 %v966, %v984
        %v986 = vmul.f32 %v985, %v985
        %v987 = vsel %vm973, %v986, 0.0
        %988 = vadd.xlane.f32.xlu0 %v987
        %v989 = vpop.xlane.xlu0 %988
        %v990 = vmul.f32 %v989, %v983
        %v991 = vadd.f32 %v990, 1e-05
        %v992 = vrsqrt.pop %v991
        %v993 = vmul.f32 %v992, %v991
        %v994 = vmul.f32 %v993, %v992
        %v995 = vmul.f32 0.5, %v994
        %v996 = vsub.f32 1.5, %v995
        %v997 = vmul.f32 %v992, %v996
        %vm998 = vweird.f32 %v991
        %vm999 = vweird.f32 %v992
        %vm1000 = vmor %vm998, %vm999
        %v1001 = vsel %vm1000, %v992, %v997
        %v1002 = vmul.f32 %v985, %v1001
        %v1004 = vperm.slane %v971, 0
        %v1006 = vmul.f32 %v1002, %v1004
        %v1008 = vperm.slane %v972, 0
        %v1010 = vadd.f32 %v1006, %v1008
        %v1011 = vpack.c.bf16 %v1010, %v1010
        %v1012 = vld [vmem:[%s744] sm:$0xf]
        %v1013 = vld [vmem:[%s744 + $0x4] sm:$0xf]
        %v1014 = vld [vmem:[%s744 + $0x8] sm:$0xf]
        %v1015 = vld [vmem:[%s744 + $0xc] sm:$0xf]
        %v1016 = vld [vmem:[%s747] sm:$0x1]
        %v1018 = vperm.slane %v1016, 0
        %v1024 = vunpack.c.l.b16 %v1012
        %v1025 = vunpack.c.l.b16 %v1013
        %v1026 = vunpack.c.l.b16 %v1014
        %v1027 = vunpack.c.l.b16 %v1015
        %v1028 = vpack.c.b16 %v1025, %v1024
        %v1029 = vpack.c.b16 %v1027, %v1026
        %v1033 = vsel %vm973, %v1011, 0
        %1035 = vmatpush.bf16.msra.mxu0 0
        %1036 = vmatpush.bf16.msra.mxu0 0
        %1037 = vmatpush.bf16.msra.mxu0 0
        %1038 = vmatpush.bf16.msra.mxu0 0
        %1039 = vmatpush.bf16.msra.mxu0 0
        %1040 = vmatpush.bf16.msra.mxu0 0
        %1041 = vmatpush.bf16.msra.mxu0 %v1029
        %1042 = vmatpush.bf16.msra.mxu0 %v1028
        %1043 = vmatmul.bf16.gmra.mxu0 %v1033
        %v1044 = vpop.f32.mrf.mxu0
        %v1045 = vadd.f32 %v1018, %v1044
        %v1046 = vpop.f32.mrf.mxu0
        %1047 = vdwg.mxu0
        %v1048 = vpack.c.bf16 %v1045, %v1045
        %1050 = vrot.lane.b32.xlu0 %v1048, 96
        %v1051 = vpop.permute.xlu0 %1050
        %vm1052 = vcmask 64512
        %v1054 = vsel %vm1052, %v1048, 0
        %v1057 = vsel %vm1052, %v1051, 0
        %1059 = vmatpush.bf16.xpose.msra.mxu0 0
        %1060 = vmatpush.bf16.xpose.msra.mxu0 0
        %1061 = vmatpush.bf16.xpose.msra.mxu0 0
        %1062 = vmatpush.bf16.xpose.msra.mxu0 0
        %1063 = vmatpush.bf16.xpose.msra.mxu0 0
        %1064 = vmatpush.bf16.xpose.msra.mxu0 0
        %1065 = vmatpush.bf16.xpose.msra.mxu0 0
        %1066 = vmatpush.bf16.xpose.msra.mxu0 %v1057
        %1067 = vmatmul.bf16.gmra.mxu0 %v1054
        %v1068 = vpop.f32.mrf.mxu0
        %v1069 = vadd.f32 %v970, %v1068
        %v1070 = vpop.f32.mrf.mxu0
        %1071 = vdwg.mxu0
        %v1072 = vsel %vm1052, %v1069, -inf
        %1073 = vmax.xlane.f32.xlu0 %v1072
        %v1074 = vpop.xlane.xlu0 %1073
        %v1075 = vsub.f32 %v1069, %v1074
        %v1076 = vmul.f32 %v1075, 1.442695
        %v1077 = vpow.pop %v1076
        %v1078 = vsel %vm1052, %v1077, 0.0
        %1079 = vadd.xlane.f32.xlu0 %v1078
        %v1080 = vpop.xlane.xlu0 %1079
        %v1081 = vrcp.pop %v1080
        %v1082 = vmul.f32 %v1077, %v1081
        %v1083 = vpack.c.bf16 %v1082, %v1082
        %1084 = vrot.lane.b32.xlu0 %v1048, 64
        %v1085 = vpop.permute.xlu0 %1084
        %v1087 = vsel %vm1052, %v1083, 0
        %vm1089 = vcmask 1043456
        %v1091 = vsel %vm1089, %v1085, 0
        %1093 = vmatpush.bf16.msra.mxu0 0
        %1094 = vmatpush.bf16.msra.mxu0 0
        %1095 = vmatpush.bf16.msra.mxu0 0
        %1096 = vmatpush.bf16.msra.mxu0 0
        %1097 = vmatpush.bf16.msra.mxu0 0
        %1098 = vmatpush.bf16.msra.mxu0 0
        %1099 = vmatpush.bf16.msra.mxu0 0
        %1100 = vmatpush.bf16.msra.mxu0 %v1091
        %1101 = vmatmul.bf16.gmra.mxu0 %v1087
        %v1102 = vpop.f32.mrf.mxu0
        %v1103 = vadd.f32 0.0, %v1102
        %v1104 = vpop.f32.mrf.mxu0
        %1105 = vdwg.mxu0
        %1106 = vrot.lane.b32.xlu0 %v1048, 120
        %v1107 = vpop.permute.xlu0 %1106
        %1108 = vrot.lane.b32.xlu0 %v1048, 88
        %v1109 = vpop.permute.xlu0 %1108
        %v1111 = vsel %vm1052, %v1107, 0
        %v1114 = vsel %vm1052, %v1109, 0
        %1116 = vmatpush.bf16.xpose.msra.mxu0 0
        %1117 = vmatpush.bf16.xpose.msra.mxu0 0
        %1118 = vmatpush.bf16.xpose.msra.mxu0 0
        %1119 = vmatpush.bf16.xpose.msra.mxu0 0
        %1120 = vmatpush.bf16.xpose.msra.mxu0 0
        %1121 = vmatpush.bf16.xpose.msra.mxu0 0
        %1122 = vmatpush.bf16.xpose.msra.mxu0 0
        %1123 = vmatpush.bf16.xpose.msra.mxu0 %v1114
        %1124 = vmatmul.bf16.gmra.mxu0 %v1111
        %v1125 = vpop.f32.mrf.mxu0
        %v1126 = vadd.f32 %v970, %v1125
        %v1127 = vpop.f32.mrf.mxu0
        %1128 = vdwg.mxu0
        %v1129 = vsel %vm1052, %v1126, -inf
        %1130 = vmax.xlane.f32.xlu0 %v1129
        %v1131 = vpop.xlane.xlu0 %1130
        %v1132 = vsub.f32 %v1126, %v1131
        %v1133 = vmul.f32 %v1132, 1.442695
        %v1134 = vpow.pop %v1133
        %v1135 = vsel %vm1052, %v1134, 0.0
        %1136 = vadd.xlane.f32.xlu0 %v1135
        %v1137 = vpop.xlane.xlu0 %1136
        %v1138 = vrcp.pop %v1137
        %v1139 = vmul.f32 %v1134, %v1138
        %v1140 = vpack.c.bf16 %v1139, %v1139
        %1141 = vrot.lane.b32.xlu0 %v1048, 56
        %v1142 = vpop.permute.xlu0 %1141
        %v1144 = vsel %vm1052, %v1140, 0
        %v1147 = vsel %vm1089, %v1142, 0
        %1149 = vmatpush.bf16.msra.mxu0 0
        %1150 = vmatpush.bf16.msra.mxu0 0
        %1151 = vmatpush.bf16.msra.mxu0 0
        %1152 = vmatpush.bf16.msra.mxu0 0
        %1153 = vmatpush.bf16.msra.mxu0 0
        %1154 = vmatpush.bf16.msra.mxu0 0
        %1155 = vmatpush.bf16.msra.mxu0 0
        %1156 = vmatpush.bf16.msra.mxu0 %v1147
        %1157 = vmatmul.bf16.gmra.mxu0 %v1144
        %v1158 = vpop.f32.mrf.mxu0
        %v1159 = vadd.f32 0.0, %v1158
        %v1160 = vpop.f32.mrf.mxu0
        %1161 = vdwg.mxu0
        %1162 = vrot.lane.b32.xlu0 %v1048, 112
        %v1163 = vpop.permute.xlu0 %1162
        %1164 = vrot.lane.b32.xlu0 %v1048, 80
        %v1165 = vpop.permute.xlu0 %1164
        %v1167 = vsel %vm1052, %v1163, 0
        %v1170 = vsel %vm1052, %v1165, 0
        %1172 = vmatpush.bf16.xpose.msra.mxu0 0
        %1173 = vmatpush.bf16.xpose.msra.mxu0 0
        %1174 = vmatpush.bf16.xpose.msra.mxu0 0
        %1175 = vmatpush.bf16.xpose.msra.mxu0 0
        %1176 = vmatpush.bf16.xpose.msra.mxu0 0
        %1177 = vmatpush.bf16.xpose.msra.mxu0 0
        %1178 = vmatpush.bf16.xpose.msra.mxu0 0
        %1179 = vmatpush.bf16.xpose.msra.mxu0 %v1170
        %1180 = vmatmul.bf16.gmra.mxu0 %v1167
        %v1181 = vpop.f32.mrf.mxu0
        %v1182 = vadd.f32 %v970, %v1181
        %v1183 = vpop.f32.mrf.mxu0
        %1184 = vdwg.mxu0
        %v1185 = vsel %vm1052, %v1182, -inf
        %1186 = vmax.xlane.f32.xlu0 %v1185
        %v1187 = vpop.xlane.xlu0 %1186
        %v1188 = vsub.f32 %v1182, %v1187
        %v1189 = vmul.f32 %v1188, 1.442695
        %v1190 = vpow.pop %v1189
        %v1191 = vsel %vm1052, %v1190, 0.0
        %1192 = vadd.xlane.f32.xlu0 %v1191
        %v1193 = vpop.xlane.xlu0 %1192
        %v1194 = vrcp.pop %v1193
        %v1195 = vmul.f32 %v1190, %v1194
        %v1196 = vpack.c.bf16 %v1195, %v1195
        %1197 = vrot.lane.b32.xlu0 %v1048, 48
        %v1198 = vpop.permute.xlu0 %1197
        %v1200 = vsel %vm1052, %v1196, 0
        %v1203 = vsel %vm1089, %v1198, 0
        %1205 = vmatpush.bf16.msra.mxu0 0
        %1206 = vmatpush.bf16.msra.mxu0 0
        %1207 = vmatpush.bf16.msra.mxu0 0
        %1208 = vmatpush.bf16.msra.mxu0 0
        %1209 = vmatpush.bf16.msra.mxu0 0
        %1210 = vmatpush.bf16.msra.mxu0 0
        %1211 = vmatpush.bf16.msra.mxu0 0
        %1212 = vmatpush.bf16.msra.mxu0 %v1203
        %1213 = vmatmul.bf16.gmra.mxu0 %v1200
        %v1214 = vpop.f32.mrf.mxu0
        %v1215 = vadd.f32 0.0, %v1214
        %v1216 = vpop.f32.mrf.mxu0
        %1217 = vdwg.mxu0
        %1218 = vrot.lane.b32.xlu0 %v1048, 104
        %v1219 = vpop.permute.xlu0 %1218
        %1220 = vrot.lane.b32.xlu0 %v1048, 72
        %v1221 = vpop.permute.xlu0 %1220
        %v1223 = vsel %vm1052, %v1219, 0
        %v1226 = vsel %vm1052, %v1221, 0
        %1228 = vmatpush.bf16.xpose.msra.mxu0 0
        %1229 = vmatpush.bf16.xpose.msra.mxu0 0
        %1230 = vmatpush.bf16.xpose.msra.mxu0 0
        %1231 = vmatpush.bf16.xpose.msra.mxu0 0
        %1232 = vmatpush.bf16.xpose.msra.mxu0 0
        %1233 = vmatpush.bf16.xpose.msra.mxu0 0
        %1234 = vmatpush.bf16.xpose.msra.mxu0 0
        %1235 = vmatpush.bf16.xpose.msra.mxu0 %v1226
        %1236 = vmatmul.bf16.gmra.mxu0 %v1223
        %v1237 = vpop.f32.mrf.mxu0
        %v1238 = vadd.f32 %v970, %v1237
        %v1239 = vpop.f32.mrf.mxu0
        %1240 = vdwg.mxu0
        %v1241 = vsel %vm1052, %v1238, -inf
        %1242 = vmax.xlane.f32.xlu0 %v1241
        %v1243 = vpop.xlane.xlu0 %1242
        %v1244 = vsub.f32 %v1238, %v1243
        %v1245 = vmul.f32 %v1244, 1.442695
        %v1246 = vpow.pop %v1245
        %v1247 = vsel %vm1052, %v1246, 0.0
        %1248 = vadd.xlane.f32.xlu0 %v1247
        %v1249 = vpop.xlane.xlu0 %1248
        %v1250 = vrcp.pop %v1249
        %v1251 = vmul.f32 %v1246, %v1250
        %v1252 = vpack.c.bf16 %v1251, %v1251
        %1253 = vrot.lane.b32.xlu0 %v1048, 40
        %v1254 = vpop.permute.xlu0 %1253
        %v1256 = vsel %vm1052, %v1252, 0
        %v1259 = vsel %vm1089, %v1254, 0
        %1261 = vmatpush.bf16.msra.mxu0 0
        %1262 = vmatpush.bf16.msra.mxu0 0
        %1263 = vmatpush.bf16.msra.mxu0 0
        %1264 = vmatpush.bf16.msra.mxu0 0
        %1265 = vmatpush.bf16.msra.mxu0 0
        %1266 = vmatpush.bf16.msra.mxu0 0
        %1267 = vmatpush.bf16.msra.mxu0 0
        %1268 = vmatpush.bf16.msra.mxu0 %v1259
        %1269 = vmatmul.bf16.gmra.mxu0 %v1256
        %v1270 = vpop.f32.mrf.mxu0
        %v1271 = vadd.f32 0.0, %v1270
        %v1272 = vpop.f32.mrf.mxu0
        %1273 = vdwg.mxu0
        %1275 = vrot.lane.b32.xlu0 %v1159, 8
        %v1276 = vpop.permute.xlu0 %1275
        %1279 = vrot.lane.b32.xlu0 %v1215, 16
        %v1280 = vpop.permute.xlu0 %1279
        %1283 = vrot.lane.b32.xlu0 %v1271, 24
        %v1284 = vpop.permute.xlu0 %1283
        %v1286 = vsel %vm1052, %v1103, %v1276
        %vm1287 = vcmask 130048
        %v1288 = vsel %vm1287, %v1286, %v1280
        %vm1289 = vcmask 195584
        %v1290 = vsel %vm1289, %v1288, %v1284
        %v1291 = vpack.c.bf16 %v1290, %v1290
        %v1292 = vld [vmem:[%s752] sm:$0xf]
        %v1293 = vld [vmem:[%s752 + $0x4] sm:$0xf]
        %v1294 = vld [vmem:[%s752 + $0x8] sm:$0xf]
        %v1295 = vld [vmem:[%s752 + $0xc] sm:$0xf]
        %v1296 = vld [vmem:[%s755] sm:$0x1]
        %v1298 = vperm.slane %v1296, 0
        %v1304 = vunpack.c.l.b16 %v1292
        %v1305 = vunpack.c.l.b16 %v1293
        %v1306 = vunpack.c.l.b16 %v1294
        %v1307 = vunpack.c.l.b16 %v1295
        %v1308 = vpack.c.b16 %v1305, %v1304
        %v1309 = vpack.c.b16 %v1307, %v1306
        %v1313 = vsel %vm973, %v1291, 0
        %1315 = vmatpush.bf16.msra.mxu0 0
        %1316 = vmatpush.bf16.msra.mxu0 0
        %1317 = vmatpush.bf16.msra.mxu0 0
        %1318 = vmatpush.bf16.msra.mxu0 0
        %1319 = vmatpush.bf16.msra.mxu0 0
        %1320 = vmatpush.bf16.msra.mxu0 0
        %1321 = vmatpush.bf16.msra.mxu0 %v1309
        %1322 = vmatpush.bf16.msra.mxu0 %v1308
        %1323 = vmatmul.bf16.gmra.mxu0 %v1313
        %v1324 = vpop.f32.mrf.mxu0
        %v1325 = vadd.f32 %v1298, %v1324
        %v1326 = vpop.f32.mrf.mxu0
        %1327 = vdwg.mxu0
        %v1328 = vadd.f32 %v966, %v1325
        %v1329 = vld [vmem:[%s758] sm:$0x1]
        %v1330 = vld [vmem:[%s761] sm:$0x1]
        %v1331 = vsel %vm973, %v1328, 0.0
        %1332 = vadd.xlane.f32.xlu0 %v1331
        %v1333 = vpop.xlane.xlu0 %1332
        %v1334 = vmul.f32 %v1333, %v983
        %v1335 = vsub.f32 %v1328, %v1334
        %v1336 = vmul.f32 %v1335, %v1335
        %v1337 = vsel %vm973, %v1336, 0.0
        %1338 = vadd.xlane.f32.xlu0 %v1337
        %v1339 = vpop.xlane.xlu0 %1338
        %v1340 = vmul.f32 %v1339, %v983
        %v1341 = vadd.f32 %v1340, 1e-05
        %v1342 = vrsqrt.pop %v1341
        %v1343 = vmul.f32 %v1342, %v1341
        %v1344 = vmul.f32 %v1343, %v1342
        %v1345 = vmul.f32 0.5, %v1344
        %v1346 = vsub.f32 1.5, %v1345
        %v1347 = vmul.f32 %v1342, %v1346
        %vm1348 = vweird.f32 %v1341
        %vm1349 = vweird.f32 %v1342
        %vm1350 = vmor %vm1348, %vm1349
        %v1351 = vsel %vm1350, %v1342, %v1347
        %v1352 = vmul.f32 %v1335, %v1351
        %v1354 = vperm.slane %v1329, 0
        %v1356 = vmul.f32 %v1352, %v1354
        %v1358 = vperm.slane %v1330, 0
        %v1360 = vadd.f32 %v1356, %v1358
        %v1361 = vpack.c.bf16 %v1360, %v1360
        %v1362 = vld [vmem:[%s766] sm:$0xf]
        %v1363 = vld [vmem:[%s766 + $0x4] sm:$0xf]
        %v1364 = vld [vmem:[%s766 + $0x8] sm:$0xf]
        %v1365 = vld [vmem:[%s766 + $0xc] sm:$0xf]
        %v1366 = vld [vmem:[%s769] sm:$0x1]
        %v1368 = vperm.slane %v1366, 0
        %v1374 = vunpack.c.l.b16 %v1362
        %v1375 = vunpack.c.l.b16 %v1363
        %v1376 = vunpack.c.l.b16 %v1364
        %v1377 = vunpack.c.l.b16 %v1365
        %v1378 = vpack.c.b16 %v1375, %v1374
        %v1379 = vpack.c.b16 %v1377, %v1376
        %v1383 = vsel %vm973, %v1361, 0
        %1385 = vmatpush.bf16.msra.mxu0 0
        %1386 = vmatpush.bf16.msra.mxu0 0
        %1387 = vmatpush.bf16.msra.mxu0 0
        %1388 = vmatpush.bf16.msra.mxu0 0
        %1389 = vmatpush.bf16.msra.mxu0 0
        %1390 = vmatpush.bf16.msra.mxu0 0
        %1391 = vmatpush.bf16.msra.mxu0 %v1379
        %1392 = vmatpush.bf16.msra.mxu0 %v1378
        %1393 = vmatmul.bf16.gmra.mxu0 %v1383
        %v1394 = vpop.f32.mrf.mxu0
        %v1395 = vadd.f32 %v1368, %v1394
        %v1396 = vpop.f32.mrf.mxu0
        %1397 = vdwg.mxu0
        %v1398 = vmul.f32 %v1395, 1.702
        %v1399 = vxor.u32 %v1398, 2147483648
        %v1400 = vmul.f32 %v1399, 1.442695
        %v1401 = vpow.pop %v1400
        %v1402 = vadd.f32 %v1401, 1.0
        %v1403 = vrcp.pop %v1402
        %v1404 = vmul.f32 %v1402, %v1403
        %v1405 = vsub.f32 1.0, %v1404
        %v1406 = vmul.f32 %v1403, %v1405
        %v1407 = vadd.f32 %v1403, %v1406
        %vm1408 = vweird.f32 %v1402
        %vm1409 = vweird.f32 %v1403
        %vm1410 = vmor %vm1408, %vm1409
        %v1411 = vsel %vm1410, %v1403, %v1407
        %v1412 = vand.u32 2147483647, %v1402
        %vm1413 = vcmp.eq.f32.partialorder %v1412, 8.507059e+37
        %v1414 = vand.u32 %v1402, 2147483648
        %v1415 = vor.u32 1.1754944e-38, %v1414
        %v1416 = vsel %vm1413, %v1415, %v1411
        %v1417 = vmul.f32 1.0, %v1416
        %v1418 = vmul.f32 %v1395, %v1417
        %v1419 = vpack.c.bf16 %v1418, %v1418
        %v1420 = vld [vmem:[%s774] sm:$0xf]
        %v1421 = vld [vmem:[%s774 + $0x4] sm:$0xf]
        %v1422 = vld [vmem:[%s774 + $0x8] sm:$0xf]
        %v1423 = vld [vmem:[%s774 + $0xc] sm:$0xf]
        %v1424 = vld [vmem:[%s774 + $0x10] sm:$0xf]
        %v1425 = vld [vmem:[%s774 + $0x14] sm:$0xf]
        %v1426 = vld [vmem:[%s774 + $0x18] sm:$0xf]
        %v1427 = vld [vmem:[%s774 + $0x1c] sm:$0xf]
        %v1428 = vld [vmem:[%s777] sm:$0x1]
        %v1430 = vperm.slane %v1428, 0
        %v1440 = vunpack.c.l.b16 %v1420
        %v1441 = vunpack.c.l.b16 %v1421
        %v1442 = vunpack.c.l.b16 %v1422
        %v1443 = vunpack.c.l.b16 %v1423
        %v1444 = vunpack.c.l.b16 %v1424
        %v1445 = vunpack.c.l.b16 %v1425
        %v1446 = vunpack.c.l.b16 %v1426
        %v1447 = vunpack.c.l.b16 %v1427
        %v1448 = vpack.c.b16 %v1441, %v1440
        %v1449 = vpack.c.b16 %v1443, %v1442
        %v1450 = vpack.c.b16 %v1445, %v1444
        %v1451 = vpack.c.b16 %v1447, %v1446
        %vm1456 = vcmask 523264
        %v1458 = vsel %vm1456, %v1419, 0
        %1460 = vmatpush.bf16.msra.mxu0 0
        %1461 = vmatpush.bf16.msra.mxu0 0
        %1462 = vmatpush.bf16.msra.mxu0 0
        %1463 = vmatpush.bf16.msra.mxu0 0
        %1464 = vmatpush.bf16.msra.mxu0 %v1451
        %1465 = vmatpush.bf16.msra.mxu0 %v1450
        %1466 = vmatpush.bf16.msra.mxu0 %v1449
        %1467 = vmatpush.bf16.msra.mxu0 %v1448
        %1468 = vmatmul.bf16.gmra.mxu0 %v1458
        %v1469 = vpop.f32.mrf.mxu0
        %v1470 = vadd.f32 %v1430, %v1469
        %v1471 = vpop.f32.mrf.mxu0
        %1472 = vdwg.mxu0
        %v1473 = vadd.f32 %v1328, %v1470
        %1474 = vst.msk [vmem:[#allocation2] sm:$0xff] %vm973, %v1473
        %p1475 = scmp.eq.s32.totalorder %s37, 1
        // Predicated region
        $region97: #{_lambda_.1} parent=91 // pred_check
          %p1476 = pneg %p1475
        $region98: #{_lambda_.1} parent=91 // pred_check_branch
          %1478 = sbr.rel (%p1476) target = $region100
        $region99: #{_lambda_.1} parent=91 // pred_region
          %vm1479 = vcmask 258049
          %1480 = vst.msk [vmem:[%s728 - $0x1] sm:$0x1e] %vm1479, %v1473
        $region100: #{_lambda_.1} parent=91 // pred_fallthru
          _
        %s1481 = sand.u32 %s495, 1
        %s1482 = scalar_lea.sflag [#allocation4], %s1481
        %s1483 = sand.u32 %s495, 1
        %s1484 = smul.addr %s1483, 4
        %s1485 = scalar_lea.vmem [#allocation3], %s1484
        // Predicated region
        $region101: #{_lambda_.1} parent=91 // pred_check
          %p1486 = pneg %p505
        $region102: #{_lambda_.1} parent=91 // pred_check_branch
          %1488 = sbr.rel (%p1486) target = $region104
        $region103: #{_lambda_.1} parent=91 // pred_region
          %1490 = vsyncadd %s1482, 0
          %s1491 = smul.addr %s36, 4
          %s1492 = scalar_lea.hbm %s18, %s1491
          %s1494 = sshll.u32 %s1485, 4
          %s1495 = int_to_ptr.vmem [resolvable:$true] %s1494
          %s1496 = sshll.u32 %s1492, 4
          %s1497 = int_to_ptr.hbm [resolvable:$true] %s1496
          %1499 = dma.vmem_to_hbm [thread:$0]  %s1495, 64, %s1497, %s1482
        $region104: #{_lambda_.1} parent=91 // pred_fallthru
          _
      $region92: #{_lambda_.1} parent=5 // pred_fallthru
        _
      %p1500 = scmp.le.s32.totalorder 2, %s27
      // Predicated region
      $region105: #{_lambda_.1} parent=5 // pred_check
        %p1501 = pneg %p1500
      $region106: #{_lambda_.1} parent=5 // pred_check_branch
        %1503 = sbr.rel (%p1501) target = $region108
      $region107: #{_lambda_.1} parent=5 // pred_region
        %s1504 = ssub.s32 %s27, 2
        // Predicated region
        $region109: #{_lambda_.1} parent=107 // pred_check
          %p1505 = pneg %p511
        $region110: #{_lambda_.1} parent=107 // pred_check_branch
          %1507 = sbr.rel (%p1505) target = $region112
        $region111: #{_lambda_.1} parent=107 // pred_region
          %s1508 = sand.u32 %s496, 1
          %s1509 = scalar_lea.sflag [#allocation4], %s1508
          %s1510 = sand.u32 %s496, 1
          %s1511 = smul.addr %s1510, 4
          %s1512 = scalar_lea.vmem [#allocation3], %s1511
          %1514 = dma.done %s1509, 64
        $region112: #{_lambda_.1} parent=107 // pred_fallthru
          _
      $region108: #{_lambda_.1} parent=5 // pred_fallthru
        _
    $region6: #{_lambda_.1} parent=1 // loop_footer
      %s31 = sadd.s32 1, %s27
    $region7: #{_lambda_.1} parent=1 // loop_footer_branch
      %26 = sbr.rel target = $region3
    $region8: #{_lambda_.1} parent=1 // loop_exit
      _
    %1515 = vsyncpa [#allocation4], 1
    %s1516 = scalar_lea.sflag [#allocation4], 1
    %1517 = vsyncpa %s1516, 1

</llo_original>
